<compile_context>
chip_gen: v6e
topology: v6e:2x2x1
jax: 0.10.0
libtpu: 0.0.40
codegen_flags: <defaults>
</compile_context>

<pallas_src>
import functools

import jax
import jax.numpy as jnp
from jax.experimental import pallas as pl
from jax.experimental.pallas import tpu as pltpu

CONV_OC = 32      # conv output channels
HIDDEN = 64       # LSTM hidden size
BN_EPS = 1e-5     # PyTorch BatchNorm1d default eps
KH, KW = 6, 4     # conv kernel (height, width)
POOL = 9          # MaxPool1d(3) o MaxPool1d(3) == max over a contiguous window of 9, stride 9


# ---------------------------------------------------------------------------
# Single fused kernel: conv + relu + pooling + (folded) batchnorm + LSTM + fc head
# ---------------------------------------------------------------------------
def _cnn_lstm_kernel(patches_ref, conv_wb_ref, wih_ref, whh_ref, headw_ref, bias_ref,
                     out_ref, *, batch, out_h, t_steps, hidden):
    f32 = jnp.float32
    H = hidden
    G = 4 * H

    # ---- Conv2d(1,32,(6,4)) + bias (folded via ones column) + ReLU: one batched matmul ----
    conv = jnp.dot(patches_ref[...], conv_wb_ref[...], preferred_element_type=f32)
    conv = jnp.maximum(conv, 0.0)                                    # (B*out_h, 32)

    # ---- MaxPool1d(3) o MaxPool1d(3): max over window 9, stride 9 — hoisted, done once ----
    conv = conv.reshape(batch, out_h, CONV_OC)[:, :POOL * t_steps, :]
    x_seq = jnp.max(conv.reshape(batch * t_steps, POOL, CONV_OC), axis=1)   # (B*T, 32)

    # ---- LSTM input projection for all timesteps at once (BatchNorm already folded in) ----
    b_eff = bias_ref[0:1, :]                                          # (1, 4H)
    gates_x = jnp.dot(x_seq, wih_ref[...], preferred_element_type=f32) + b_eff  # (B*T, 4H)
    gates_x = gates_x.reshape(batch, t_steps, G).transpose(1, 0, 2)   # (T, B, 4H)

    # ---- LSTM(32 -> 64) recurrence, PyTorch gate order [i, f, g, o] ----
    # sigmoid(z) = 0.5*tanh(z/2) + 0.5; the i/f/o gate columns of W_ih/W_hh/b were
    # pre-scaled by 0.5 host-side, so ONE tanh over all 4H lanes handles every gate.
    whh = whh_ref[...]                                                # (H, 4H), gate-scaled
    h = jnp.zeros((batch, H), f32)
    c = jnp.zeros((batch, H), f32)
    for t in range(t_steps):                                          # tiny static trip count
        pre = gates_x[t] + jnp.dot(h, whh, preferred_element_type=f32)   # (B, 4H)
        tg = jnp.tanh(pre)                                            # one EUP pass
        i_g = 0.5 * tg[:, 0 * H:1 * H] + 0.5
        f_g = 0.5 * tg[:, 1 * H:2 * H] + 0.5
        g_g = tg[:, 2 * H:3 * H]
        o_g = 0.5 * tg[:, 3 * H:4 * H] + 0.5
        c = f_g * c + i_g * g_g
        h = o_g * jnp.tanh(c)

    # ---- FC head on the last step: Linear(64,8) -> ReLU -> Dropout(eval id) -> Linear(8,2) ----
    w1 = headw_ref[0:HIDDEN, :]                                       # (64, 8)
    w2 = headw_ref[HIDDEN:HIDDEN + 8, 0:2]                            # (8, 2)
    fc1_b = bias_ref[1:2, 0:8]
    fc2_b = bias_ref[2:3, 0:2]
    y = jnp.maximum(jnp.dot(h, w1, preferred_element_type=f32) + fc1_b, 0.0)
    # TODO(synk): training-mode dropout (Bernoulli mask via pltpu.prng_*) intentionally omitted.
    out = jnp.dot(y, w2, preferred_element_type=f32) + fc2_b
    out_ref[...] = out.astype(out_ref.dtype)


# ---------------------------------------------------------------------------
# Wrapper: host-side im2col / BN folding / gate pre-scale / parameter packing
# ---------------------------------------------------------------------------
def cnn_lstm_forward(dna_forward, params):
    B, C, Hin, Win = dna_forward.shape
    assert C == 1, "Conv2d expects a single input channel"
    assert Win == KW, "one-hot DNA width 4 assumed (conv kernel width == input width)"
    # TODO(synk): general input widths (conv output width > 1) not implemented.
    out_h = Hin - (KH - 1)
    t_steps = out_h // POOL
    assert t_steps >= 1, "sequence too short for two MaxPool1d(3) stages"
    G = 4 * HIDDEN

    x = dna_forward.reshape(B, Hin, Win).astype(jnp.float32)

    # im2col (layout plumbing; XLA handles it well). patch index = di*4 + dj, matching conv_w.
    patches = jnp.concatenate([x[:, di:di + out_h, :] for di in range(KH)], axis=-1)
    patches = patches.reshape(B * out_h, KH * KW)
    patches = jnp.concatenate([patches, jnp.ones((B * out_h, 1), jnp.float32)], axis=-1)
    conv_wb = jnp.concatenate([params["conv_w"], params["conv_b"].reshape(1, CONV_OC)], axis=0)

    # Fold eval-mode BatchNorm1d(32) into the LSTM input projection, merge the LSTM biases,
    # and pre-scale the sigmoid gates (i, f, o) by 0.5 (tanh-based sigmoid in the kernel).
    scale = params["bn_gamma"].reshape(-1) * jax.lax.rsqrt(params["bn_var"].reshape(-1) + BN_EPS)
    shift = params["bn_beta"].reshape(-1) - params["bn_mean"].reshape(-1) * scale
    gvec = jnp.concatenate([jnp.full((2 * HIDDEN,), 0.5, jnp.float32),   # i, f
                            jnp.ones((HIDDEN,), jnp.float32),            # g
                            jnp.full((HIDDEN,), 0.5, jnp.float32)])      # o
    wih_eff = (params["lstm_wih"] * scale[:, None]) * gvec[None, :]      # (32, 4H)
    whh_s = params["lstm_whh"] * gvec[None, :]                           # (64, 4H)
    b_eff = (params["lstm_bih"].reshape(-1) + params["lstm_bhh"].reshape(-1)
             + shift @ params["lstm_wih"]) * gvec                        # (4H,)

    # Pack remaining small vectors / head weights -> fewer DMA descriptors.
    bias_pack = jnp.zeros((3, G), jnp.float32)
    bias_pack = bias_pack.at[0].set(b_eff)
    bias_pack = bias_pack.at[1, :8].set(params["fc1_b"].reshape(-1))
    bias_pack = bias_pack.at[2, :2].set(params["fc2_b"].reshape(-1))
    head_w = jnp.zeros((HIDDEN + 8, 8), jnp.float32)
    head_w = head_w.at[:HIDDEN, :].set(params["fc1_w"])
    head_w = head_w.at[HIDDEN:, :2].set(params["fc2_w"])

    args = (patches, conv_wb, wih_eff, whh_s, head_w, bias_pack)

    flops = (2 * B * out_h * (KH * KW + 1) * CONV_OC
             + 2 * B * t_steps * CONV_OC * G
             + t_steps * (2 * B * HIDDEN * G + 16 * B * HIDDEN)
             + 2 * B * HIDDEN * 8 + 2 * B * 8 * 2)
    transcendentals = t_steps * B * (G + HIDDEN)
    bytes_accessed = 4 * (sum(int(a.size) for a in args) + B * 2)

    kernel = functools.partial(_cnn_lstm_kernel, batch=B, out_h=out_h,
                               t_steps=t_steps, hidden=HIDDEN)

    vmem = pl.BlockSpec(memory_space=pltpu.MemorySpace.VMEM)
    # NOTE: gridless single-TC call (whole model < 0.2 MB, latency/overhead-bound).
    # On v7x a batch grid with dimension_semantics=("parallel",) could split the batch
    # across the two TensorCores once B is large enough for that to pay off.
    return pl.pallas_call(
        kernel,
        out_shape=jax.ShapeDtypeStruct((B, 2), jnp.float32),
        in_specs=[vmem] * len(args),
        out_specs=vmem,
        cost_estimate=pl.CostEstimate(flops=flops,
                                      transcendentals=transcendentals,
                                      bytes_accessed=bytes_accessed),
    )(*args)


# ---------------------------------------------------------------------------
# Parameter construction (deterministic; non-trivial BN stats to exercise the fold)
# ---------------------------------------------------------------------------
def make_params(key):
    ks = jax.random.split(key, 14)

    def unif(k, shape, bound):
        return jax.random.uniform(k, shape, jnp.float32, -bound, bound)

    bc = 1.0 / (1 * KH * KW) ** 0.5
    bl = 1.0 / HIDDEN ** 0.5
    b1 = 1.0 / 64 ** 0.5
    b2 = 1.0 / 8 ** 0.5
    return {
        "conv_w": unif(ks[0], (KH * KW, CONV_OC), bc),        # [di*4 + dj, out_channel]
        "conv_b": unif(ks[1], (1, CONV_OC), bc),
        "bn_gamma": jax.random.uniform(ks[2], (1, CONV_OC), jnp.float32, 0.5, 1.5),
        "bn_beta": jax.random.uniform(ks[3], (1, CONV_OC), jnp.float32, -0.5, 0.5),
        "bn_mean": jax.random.uniform(ks[4], (1, CONV_OC), jnp.float32, -0.5, 0.5),
        "bn_var": jax.random.uniform(ks[5], (1, CONV_OC), jnp.float32, 0.5, 1.5),
        "lstm_wih": unif(ks[6], (CONV_OC, 4 * HIDDEN), bl),   # W_ih^T
        "lstm_whh": unif(ks[7], (HIDDEN, 4 * HIDDEN), bl),    # W_hh^T
        "lstm_bih": unif(ks[8], (1, 4 * HIDDEN), bl),
        "lstm_bhh": unif(ks[9], (1, 4 * HIDDEN), bl),
        "fc1_w": unif(ks[10], (HIDDEN, 8), b1),
        "fc1_b": unif(ks[11], (1, 8), b1),
        "fc2_w": unif(ks[12], (8, 2), b2),
        "fc2_b": unif(ks[13], (1, 2), b2),
    }


# ---------------------------------------------------------------------------
# Pure-JAX reference of the same math (literal two-stage pooling, channels-first)
# ---------------------------------------------------------------------------
def reference_forward(dna_forward, params):
    B, _, H, W = dna_forward.shape
    out_h, out_w = H - (KH - 1), W - (KW - 1)
    hi = jax.lax.Precision.HIGHEST
    x = dna_forward[:, 0]                                    # (B, H, W)

    patches = jnp.stack([x[:, di:di + out_h, dj:dj + out_w]
                         for di in range(KH) for dj in range(KW)], axis=-1)  # (B, OH, OW, 24)
    conv = jnp.einsum("bhwk,kc->bchw", patches, params["conv_w"], precision=hi)
    conv = conv + params["conv_b"].reshape(1, CONV_OC, 1, 1)
    conv = jnp.maximum(conv, 0.0)
    conv = conv.reshape(B, CONV_OC, out_h * out_w)           # Flatten(start_dim=2)
    for _ in range(2):                                       # MaxPool1d(3) twice
        L = conv.shape[-1] // 3
        conv = conv[:, :, :L * 3].reshape(B, CONV_OC, L, 3).max(-1)
    scale = params["bn_gamma"].reshape(1, CONV_OC, 1) / jnp.sqrt(
        params["bn_var"].reshape(1, CONV_OC, 1) + BN_EPS)
    conv = (conv - params["bn_mean"].reshape(1, CONV_OC, 1)) * scale \
        + params["bn_beta"].reshape(1, CONV_OC, 1)
    seq = conv.transpose(0, 2, 1)                            # (B, T, 32)

    h = jnp.zeros((B, HIDDEN), jnp.float32)
    c = jnp.zeros((B, HIDDEN), jnp.float32)
    bb = params["lstm_bih"] + params["lstm_bhh"]
    for t in range(seq.shape[1]):
        gates = (jnp.dot(seq[:, t], params["lstm_wih"], precision=hi)
                 + jnp.dot(h, params["lstm_whh"], precision=hi) + bb)
        i = jax.nn.sigmoid(gates[:, :HIDDEN])
        f = jax.nn.sigmoid(gates[:, HIDDEN:2 * HIDDEN])
        g = jnp.tanh(gates[:, 2 * HIDDEN:3 * HIDDEN])
        o = jax.nn.sigmoid(gates[:, 3 * HIDDEN:])
        c = f * c + i * g
        h = o * jnp.tanh(c)
    y = jnp.maximum(jnp.dot(h, params["fc1_w"], precision=hi) + params["fc1_b"], 0.0)
    return jnp.dot(y, params["fc2_w"], precision=hi) + params["fc2_b"]


if __name__ == "__main__":
    BATCH, SEQ_LEN = 2, 50                 # input (B, 1, 50, 4): one-hot DNA style
    key = jax.random.PRNGKey(0)
    k_in, k_par = jax.random.split(key)

    dna_forward = jax.random.normal(k_in, (BATCH, 1, SEQ_LEN, 4), dtype=jnp.float32)
    params = make_params(k_par)

    out = jax.jit(cnn_lstm_forward)(dna_forward, params)
    out = jax.block_until_ready(out)

    expected = reference_forward(dna_forward, params)
    assert out.shape == (BATCH, 2), out.shape
    assert jnp.allclose(out, expected, atol=1e-3, rtol=1e-3), (
        float(jnp.max(jnp.abs(out - expected))))

    print("KERNEL_OK")
</pallas_src>

<mosaic_0001>
module attributes {stable_mosaic.version = 11 : i64} {
  func.func @_cnn_lstm_kernel(%arg0: memref<90x25xf32, #tpu.memory_space<vmem>>, %arg1: memref<25x32xf32, #tpu.memory_space<vmem>>, %arg2: memref<32x256xf32, #tpu.memory_space<vmem>>, %arg3: memref<64x256xf32, #tpu.memory_space<vmem>>, %arg4: memref<72x8xf32, #tpu.memory_space<vmem>>, %arg5: memref<3x256xf32, #tpu.memory_space<vmem>>, %arg6: memref<2x2xf32, #tpu.memory_space<vmem>>) attributes {dimension_semantics = [], scalar_prefetch = 0 : i64, scratch_operands = 0 : i64, tpu.core_type = #tpu.core_type<tc>} {
    %c0 = arith.constant 0 : index
    %c0_0 = arith.constant 0 : index
    %0 = vector.load %arg0[%c0, %c0_0] : memref<90x25xf32, #tpu.memory_space<vmem>>, vector<90x25xf32>
    %c0_1 = arith.constant 0 : index
    %c0_2 = arith.constant 0 : index
    %1 = vector.load %arg1[%c0_1, %c0_2] : memref<25x32xf32, #tpu.memory_space<vmem>>, vector<25x32xf32>
    %cst = arith.constant dense<0.000000e+00> : vector<90x32xf32>
    %2 = tpu.matmul %0, %1, %cst {dimension_numbers = #tpu.dot_dimension_numbers<[1], [0], [0], [1], [0, 0, 1, 1], [], []>} : vector<90x25xf32>, vector<25x32xf32>, vector<90x32xf32> -> vector<90x32xf32>
    %cst_3 = arith.constant 0.000000e+00 : f32
    %3 = vector.broadcast %cst_3 : f32 to vector<90x32xf32>
    %4 = arith.maximumf %2, %3 : vector<90x32xf32>
    %5 = vector.shape_cast %4 : vector<90x32xf32> to vector<2x45x32xf32>
    %6 = vector.shape_cast %5 : vector<2x45x32xf32> to vector<10x9x32xf32>
    %cst_4 = arith.constant dense<0xFF800000> : vector<10x32xf32>
    %7 = vector.multi_reduction <maximumf>, %6, %cst_4 [1] : vector<10x9x32xf32> to vector<10x32xf32>
    %c0_5 = arith.constant 0 : index
    %c0_6 = arith.constant 0 : index
    %8 = vector.load %arg5[%c0_5, %c0_6] : memref<3x256xf32, #tpu.memory_space<vmem>>, vector<1x256xf32>
    %c0_7 = arith.constant 0 : index
    %c0_8 = arith.constant 0 : index
    %9 = vector.load %arg2[%c0_7, %c0_8] : memref<32x256xf32, #tpu.memory_space<vmem>>, vector<32x256xf32>
    %cst_9 = arith.constant dense<0.000000e+00> : vector<10x256xf32>
    %10 = tpu.matmul %7, %9, %cst_9 {dimension_numbers = #tpu.dot_dimension_numbers<[1], [0], [0], [1], [0, 0, 1, 1], [], []>} : vector<10x32xf32>, vector<32x256xf32>, vector<10x256xf32> -> vector<10x256xf32>
    %11 = vector.broadcast %8 : vector<1x256xf32> to vector<10x256xf32>
    %12 = arith.addf %10, %11 : vector<10x256xf32>
    %13 = vector.shape_cast %12 : vector<10x256xf32> to vector<2x5x256xf32>
    %14 = tpu.transpose %13, [1, 0, 2] : vector<2x5x256xf32> -> vector<5x2x256xf32>
    %c0_10 = arith.constant 0 : index
    %c0_11 = arith.constant 0 : index
    %15 = vector.load %arg3[%c0_10, %c0_11] : memref<64x256xf32, #tpu.memory_space<vmem>>, vector<64x256xf32>
    %cst_12 = arith.constant 0.000000e+00 : f32
    %16 = vector.broadcast %cst_12 : f32 to vector<2x64xf32>
    %cst_13 = arith.constant 0.000000e+00 : f32
    %17 = vector.broadcast %cst_13 : f32 to vector<2x64xf32>
    %18 = vector.extract_strided_slice %14 {offsets = [0, 0, 0], sizes = [1, 2, 256], strides = [1, 1, 1]} : vector<5x2x256xf32> to vector<1x2x256xf32>
    %19 = vector.shape_cast %18 : vector<1x2x256xf32> to vector<2x256xf32>
    %cst_14 = arith.constant dense<0.000000e+00> : vector<2x256xf32>
    %20 = tpu.matmul %16, %15, %cst_14 {dimension_numbers = #tpu.dot_dimension_numbers<[1], [0], [0], [1], [0, 0, 1, 1], [], []>} : vector<2x64xf32>, vector<64x256xf32>, vector<2x256xf32> -> vector<2x256xf32>
    %21 = arith.addf %19, %20 : vector<2x256xf32>
    %22 = math.tanh %21 : vector<2x256xf32>
    %23 = vector.extract_strided_slice %22 {offsets = [0, 0], sizes = [2, 64], strides = [1, 1]} : vector<2x256xf32> to vector<2x64xf32>
    %cst_15 = arith.constant 5.000000e-01 : f32
    %24 = vector.broadcast %cst_15 : f32 to vector<2x64xf32>
    %25 = arith.mulf %24, %23 : vector<2x64xf32>
    %cst_16 = arith.constant 5.000000e-01 : f32
    %26 = vector.broadcast %cst_16 : f32 to vector<2x64xf32>
    %27 = arith.addf %25, %26 : vector<2x64xf32>
    %28 = vector.extract_strided_slice %22 {offsets = [0, 64], sizes = [2, 64], strides = [1, 1]} : vector<2x256xf32> to vector<2x64xf32>
    %cst_17 = arith.constant 5.000000e-01 : f32
    %29 = vector.broadcast %cst_17 : f32 to vector<2x64xf32>
    %30 = arith.mulf %29, %28 : vector<2x64xf32>
    %cst_18 = arith.constant 5.000000e-01 : f32
    %31 = vector.broadcast %cst_18 : f32 to vector<2x64xf32>
    %32 = arith.addf %30, %31 : vector<2x64xf32>
    %33 = vector.extract_strided_slice %22 {offsets = [0, 128], sizes = [2, 64], strides = [1, 1]} : vector<2x256xf32> to vector<2x64xf32>
    %34 = vector.extract_strided_slice %22 {offsets = [0, 192], sizes = [2, 64], strides = [1, 1]} : vector<2x256xf32> to vector<2x64xf32>
    %cst_19 = arith.constant 5.000000e-01 : f32
    %35 = vector.broadcast %cst_19 : f32 to vector<2x64xf32>
    %36 = arith.mulf %35, %34 : vector<2x64xf32>
    %cst_20 = arith.constant 5.000000e-01 : f32
    %37 = vector.broadcast %cst_20 : f32 to vector<2x64xf32>
    %38 = arith.addf %36, %37 : vector<2x64xf32>
    %39 = arith.mulf %32, %17 : vector<2x64xf32>
    %40 = arith.mulf %27, %33 : vector<2x64xf32>
    %41 = arith.addf %39, %40 : vector<2x64xf32>
    %42 = math.tanh %41 : vector<2x64xf32>
    %43 = arith.mulf %38, %42 : vector<2x64xf32>
    %44 = vector.extract_strided_slice %14 {offsets = [1, 0, 0], sizes = [1, 2, 256], strides = [1, 1, 1]} : vector<5x2x256xf32> to vector<1x2x256xf32>
    %45 = vector.shape_cast %44 : vector<1x2x256xf32> to vector<2x256xf32>
    %cst_21 = arith.constant dense<0.000000e+00> : vector<2x256xf32>
    %46 = tpu.matmul %43, %15, %cst_21 {dimension_numbers = #tpu.dot_dimension_numbers<[1], [0], [0], [1], [0, 0, 1, 1], [], []>} : vector<2x64xf32>, vector<64x256xf32>, vector<2x256xf32> -> vector<2x256xf32>
    %47 = arith.addf %45, %46 : vector<2x256xf32>
    %48 = math.tanh %47 : vector<2x256xf32>
    %49 = vector.extract_strided_slice %48 {offsets = [0, 0], sizes = [2, 64], strides = [1, 1]} : vector<2x256xf32> to vector<2x64xf32>
    %cst_22 = arith.constant 5.000000e-01 : f32
    %50 = vector.broadcast %cst_22 : f32 to vector<2x64xf32>
    %51 = arith.mulf %50, %49 : vector<2x64xf32>
    %cst_23 = arith.constant 5.000000e-01 : f32
    %52 = vector.broadcast %cst_23 : f32 to vector<2x64xf32>
    %53 = arith.addf %51, %52 : vector<2x64xf32>
    %54 = vector.extract_strided_slice %48 {offsets = [0, 64], sizes = [2, 64], strides = [1, 1]} : vector<2x256xf32> to vector<2x64xf32>
    %cst_24 = arith.constant 5.000000e-01 : f32
    %55 = vector.broadcast %cst_24 : f32 to vector<2x64xf32>
    %56 = arith.mulf %55, %54 : vector<2x64xf32>
    %cst_25 = arith.constant 5.000000e-01 : f32
    %57 = vector.broadcast %cst_25 : f32 to vector<2x64xf32>
    %58 = arith.addf %56, %57 : vector<2x64xf32>
    %59 = vector.extract_strided_slice %48 {offsets = [0, 128], sizes = [2, 64], strides = [1, 1]} : vector<2x256xf32> to vector<2x64xf32>
    %60 = vector.extract_strided_slice %48 {offsets = [0, 192], sizes = [2, 64], strides = [1, 1]} : vector<2x256xf32> to vector<2x64xf32>
    %cst_26 = arith.constant 5.000000e-01 : f32
    %61 = vector.broadcast %cst_26 : f32 to vector<2x64xf32>
    %62 = arith.mulf %61, %60 : vector<2x64xf32>
    %cst_27 = arith.constant 5.000000e-01 : f32
    %63 = vector.broadcast %cst_27 : f32 to vector<2x64xf32>
    %64 = arith.addf %62, %63 : vector<2x64xf32>
    %65 = arith.mulf %58, %41 : vector<2x64xf32>
    %66 = arith.mulf %53, %59 : vector<2x64xf32>
    %67 = arith.addf %65, %66 : vector<2x64xf32>
    %68 = math.tanh %67 : vector<2x64xf32>
    %69 = arith.mulf %64, %68 : vector<2x64xf32>
    %70 = vector.extract_strided_slice %14 {offsets = [2, 0, 0], sizes = [1, 2, 256], strides = [1, 1, 1]} : vector<5x2x256xf32> to vector<1x2x256xf32>
    %71 = vector.shape_cast %70 : vector<1x2x256xf32> to vector<2x256xf32>
    %cst_28 = arith.constant dense<0.000000e+00> : vector<2x256xf32>
    %72 = tpu.matmul %69, %15, %cst_28 {dimension_numbers = #tpu.dot_dimension_numbers<[1], [0], [0], [1], [0, 0, 1, 1], [], []>} : vector<2x64xf32>, vector<64x256xf32>, vector<2x256xf32> -> vector<2x256xf32>
    %73 = arith.addf %71, %72 : vector<2x256xf32>
    %74 = math.tanh %73 : vector<2x256xf32>
    %75 = vector.extract_strided_slice %74 {offsets = [0, 0], sizes = [2, 64], strides = [1, 1]} : vector<2x256xf32> to vector<2x64xf32>
    %cst_29 = arith.constant 5.000000e-01 : f32
    %76 = vector.broadcast %cst_29 : f32 to vector<2x64xf32>
    %77 = arith.mulf %76, %75 : vector<2x64xf32>
    %cst_30 = arith.constant 5.000000e-01 : f32
    %78 = vector.broadcast %cst_30 : f32 to vector<2x64xf32>
    %79 = arith.addf %77, %78 : vector<2x64xf32>
    %80 = vector.extract_strided_slice %74 {offsets = [0, 64], sizes = [2, 64], strides = [1, 1]} : vector<2x256xf32> to vector<2x64xf32>
    %cst_31 = arith.constant 5.000000e-01 : f32
    %81 = vector.broadcast %cst_31 : f32 to vector<2x64xf32>
    %82 = arith.mulf %81, %80 : vector<2x64xf32>
    %cst_32 = arith.constant 5.000000e-01 : f32
    %83 = vector.broadcast %cst_32 : f32 to vector<2x64xf32>
    %84 = arith.addf %82, %83 : vector<2x64xf32>
    %85 = vector.extract_strided_slice %74 {offsets = [0, 128], sizes = [2, 64], strides = [1, 1]} : vector<2x256xf32> to vector<2x64xf32>
    %86 = vector.extract_strided_slice %74 {offsets = [0, 192], sizes = [2, 64], strides = [1, 1]} : vector<2x256xf32> to vector<2x64xf32>
    %cst_33 = arith.constant 5.000000e-01 : f32
    %87 = vector.broadcast %cst_33 : f32 to vector<2x64xf32>
    %88 = arith.mulf %87, %86 : vector<2x64xf32>
    %cst_34 = arith.constant 5.000000e-01 : f32
    %89 = vector.broadcast %cst_34 : f32 to vector<2x64xf32>
    %90 = arith.addf %88, %89 : vector<2x64xf32>
    %91 = arith.mulf %84, %67 : vector<2x64xf32>
    %92 = arith.mulf %79, %85 : vector<2x64xf32>
    %93 = arith.addf %91, %92 : vector<2x64xf32>
    %94 = math.tanh %93 : vector<2x64xf32>
    %95 = arith.mulf %90, %94 : vector<2x64xf32>
    %96 = vector.extract_strided_slice %14 {offsets = [3, 0, 0], sizes = [1, 2, 256], strides = [1, 1, 1]} : vector<5x2x256xf32> to vector<1x2x256xf32>
    %97 = vector.shape_cast %96 : vector<1x2x256xf32> to vector<2x256xf32>
    %cst_35 = arith.constant dense<0.000000e+00> : vector<2x256xf32>
    %98 = tpu.matmul %95, %15, %cst_35 {dimension_numbers = #tpu.dot_dimension_numbers<[1], [0], [0], [1], [0, 0, 1, 1], [], []>} : vector<2x64xf32>, vector<64x256xf32>, vector<2x256xf32> -> vector<2x256xf32>
    %99 = arith.addf %97, %98 : vector<2x256xf32>
    %100 = math.tanh %99 : vector<2x256xf32>
    %101 = vector.extract_strided_slice %100 {offsets = [0, 0], sizes = [2, 64], strides = [1, 1]} : vector<2x256xf32> to vector<2x64xf32>
    %cst_36 = arith.constant 5.000000e-01 : f32
    %102 = vector.broadcast %cst_36 : f32 to vector<2x64xf32>
    %103 = arith.mulf %102, %101 : vector<2x64xf32>
    %cst_37 = arith.constant 5.000000e-01 : f32
    %104 = vector.broadcast %cst_37 : f32 to vector<2x64xf32>
    %105 = arith.addf %103, %104 : vector<2x64xf32>
    %106 = vector.extract_strided_slice %100 {offsets = [0, 64], sizes = [2, 64], strides = [1, 1]} : vector<2x256xf32> to vector<2x64xf32>
    %cst_38 = arith.constant 5.000000e-01 : f32
    %107 = vector.broadcast %cst_38 : f32 to vector<2x64xf32>
    %108 = arith.mulf %107, %106 : vector<2x64xf32>
    %cst_39 = arith.constant 5.000000e-01 : f32
    %109 = vector.broadcast %cst_39 : f32 to vector<2x64xf32>
    %110 = arith.addf %108, %109 : vector<2x64xf32>
    %111 = vector.extract_strided_slice %100 {offsets = [0, 128], sizes = [2, 64], strides = [1, 1]} : vector<2x256xf32> to vector<2x64xf32>
    %112 = vector.extract_strided_slice %100 {offsets = [0, 192], sizes = [2, 64], strides = [1, 1]} : vector<2x256xf32> to vector<2x64xf32>
    %cst_40 = arith.constant 5.000000e-01 : f32
    %113 = vector.broadcast %cst_40 : f32 to vector<2x64xf32>
    %114 = arith.mulf %113, %112 : vector<2x64xf32>
    %cst_41 = arith.constant 5.000000e-01 : f32
    %115 = vector.broadcast %cst_41 : f32 to vector<2x64xf32>
    %116 = arith.addf %114, %115 : vector<2x64xf32>
    %117 = arith.mulf %110, %93 : vector<2x64xf32>
    %118 = arith.mulf %105, %111 : vector<2x64xf32>
    %119 = arith.addf %117, %118 : vector<2x64xf32>
    %120 = math.tanh %119 : vector<2x64xf32>
    %121 = arith.mulf %116, %120 : vector<2x64xf32>
    %122 = vector.extract_strided_slice %14 {offsets = [4, 0, 0], sizes = [1, 2, 256], strides = [1, 1, 1]} : vector<5x2x256xf32> to vector<1x2x256xf32>
    %123 = vector.shape_cast %122 : vector<1x2x256xf32> to vector<2x256xf32>
    %cst_42 = arith.constant dense<0.000000e+00> : vector<2x256xf32>
    %124 = tpu.matmul %121, %15, %cst_42 {dimension_numbers = #tpu.dot_dimension_numbers<[1], [0], [0], [1], [0, 0, 1, 1], [], []>} : vector<2x64xf32>, vector<64x256xf32>, vector<2x256xf32> -> vector<2x256xf32>
    %125 = arith.addf %123, %124 : vector<2x256xf32>
    %126 = math.tanh %125 : vector<2x256xf32>
    %127 = vector.extract_strided_slice %126 {offsets = [0, 0], sizes = [2, 64], strides = [1, 1]} : vector<2x256xf32> to vector<2x64xf32>
    %cst_43 = arith.constant 5.000000e-01 : f32
    %128 = vector.broadcast %cst_43 : f32 to vector<2x64xf32>
    %129 = arith.mulf %128, %127 : vector<2x64xf32>
    %cst_44 = arith.constant 5.000000e-01 : f32
    %130 = vector.broadcast %cst_44 : f32 to vector<2x64xf32>
    %131 = arith.addf %129, %130 : vector<2x64xf32>
    %132 = vector.extract_strided_slice %126 {offsets = [0, 64], sizes = [2, 64], strides = [1, 1]} : vector<2x256xf32> to vector<2x64xf32>
    %cst_45 = arith.constant 5.000000e-01 : f32
    %133 = vector.broadcast %cst_45 : f32 to vector<2x64xf32>
    %134 = arith.mulf %133, %132 : vector<2x64xf32>
    %cst_46 = arith.constant 5.000000e-01 : f32
    %135 = vector.broadcast %cst_46 : f32 to vector<2x64xf32>
    %136 = arith.addf %134, %135 : vector<2x64xf32>
    %137 = vector.extract_strided_slice %126 {offsets = [0, 128], sizes = [2, 64], strides = [1, 1]} : vector<2x256xf32> to vector<2x64xf32>
    %138 = vector.extract_strided_slice %126 {offsets = [0, 192], sizes = [2, 64], strides = [1, 1]} : vector<2x256xf32> to vector<2x64xf32>
    %cst_47 = arith.constant 5.000000e-01 : f32
    %139 = vector.broadcast %cst_47 : f32 to vector<2x64xf32>
    %140 = arith.mulf %139, %138 : vector<2x64xf32>
    %cst_48 = arith.constant 5.000000e-01 : f32
    %141 = vector.broadcast %cst_48 : f32 to vector<2x64xf32>
    %142 = arith.addf %140, %141 : vector<2x64xf32>
    %143 = arith.mulf %136, %119 : vector<2x64xf32>
    %144 = arith.mulf %131, %137 : vector<2x64xf32>
    %145 = arith.addf %143, %144 : vector<2x64xf32>
    %146 = math.tanh %145 : vector<2x64xf32>
    %147 = arith.mulf %142, %146 : vector<2x64xf32>
    %c0_49 = arith.constant 0 : index
    %c0_50 = arith.constant 0 : index
    %148 = vector.load %arg4[%c0_49, %c0_50] : memref<72x8xf32, #tpu.memory_space<vmem>>, vector<64x8xf32>
    %c64 = arith.constant 64 : index
    %c0_51 = arith.constant 0 : index
    %149 = vector.load %arg4[%c64, %c0_51] : memref<72x8xf32, #tpu.memory_space<vmem>>, vector<8x2xf32>
    %c1 = arith.constant 1 : index
    %c0_52 = arith.constant 0 : index
    %150 = vector.load %arg5[%c1, %c0_52] : memref<3x256xf32, #tpu.memory_space<vmem>>, vector<1x8xf32>
    %c2 = arith.constant 2 : index
    %c0_53 = arith.constant 0 : index
    %151 = vector.load %arg5[%c2, %c0_53] : memref<3x256xf32, #tpu.memory_space<vmem>>, vector<1x2xf32>
    %cst_54 = arith.constant dense<0.000000e+00> : vector<2x8xf32>
    %152 = tpu.matmul %147, %148, %cst_54 {dimension_numbers = #tpu.dot_dimension_numbers<[1], [0], [0], [1], [0, 0, 1, 1], [], []>} : vector<2x64xf32>, vector<64x8xf32>, vector<2x8xf32> -> vector<2x8xf32>
    %153 = vector.broadcast %150 : vector<1x8xf32> to vector<2x8xf32>
    %154 = arith.addf %152, %153 : vector<2x8xf32>
    %cst_55 = arith.constant 0.000000e+00 : f32
    %155 = vector.broadcast %cst_55 : f32 to vector<2x8xf32>
    %156 = arith.maximumf %154, %155 : vector<2x8xf32>
    %cst_56 = arith.constant dense<0.000000e+00> : vector<2x2xf32>
    %157 = tpu.matmul %156, %149, %cst_56 {dimension_numbers = #tpu.dot_dimension_numbers<[1], [0], [0], [1], [0, 0, 1, 1], [], []>} : vector<2x8xf32>, vector<8x2xf32>, vector<2x2xf32> -> vector<2x2xf32>
    %158 = vector.broadcast %151 : vector<1x2xf32> to vector<2x2xf32>
    %159 = arith.addf %157, %158 : vector<2x2xf32>
    %c0_57 = arith.constant 0 : index
    %c0_58 = arith.constant 0 : index
    %160 = vector.load %arg6[%c0_57, %c0_58] : memref<2x2xf32, #tpu.memory_space<vmem>>, vector<2x2xf32>
    tpu.vector_store %arg6[%c0_57, %c0_58], %159 {strides = array<i32>} : memref<2x2xf32, #tpu.memory_space<vmem>>, vector<2x2xf32>,
    return
  }
}

</mosaic_0001>

<llo_original>
// kernel: cnn_lstm_forward.1
$region0: #{cnn_lstm_forward.1}
  #allocation0 [shape = 'u32[]', space=smem, size = 0x4, offset = 0x4, fixed_abs, tag = 'smem constant byte address 0x4 - core index']
  #allocation1 [shape = 'u32[144,128]{1,0:T(1,128)}', space=vmem, size = 0x12000, scoped, tag = 'internal scratch']
  %s0 = inlined_call_operand.vmem [shape: f32[90,25], index: 0, kind: input, shape index: {}]
  %s1 = inlined_call_operand.vmem [shape: f32[25,32], index: 1, kind: input, shape index: {}]
  %s2 = inlined_call_operand.vmem [shape: f32[32,256], index: 2, kind: input, shape index: {}]
  %s3 = inlined_call_operand.vmem [shape: f32[64,256], index: 3, kind: input, shape index: {}]
  %s4 = inlined_call_operand.vmem [shape: f32[72,8], index: 4, kind: input, shape index: {}]
  %s5 = inlined_call_operand.vmem [shape: f32[3,256], index: 5, kind: input, shape index: {}]
  %s6 = inlined_call_operand.hbm [shape: f32[2,2], index: 6, kind: output, shape index: {}]
  %s7 = sld [smem:[#allocation0]]
  $region34: #{cnn_lstm_forward.1} parent=0
    _
  %s9 = ssub.s32 1, %s7
  %s10 = scalar_select 0, %s9, %s7
  $region1: #{cnn_lstm_forward.1} parent=0
    #allocation2 [shape = 'u8[1024]{0}', space=vmem, size = 0x400, scoped, tag = 'output window, operand 0, single buffered']
    #allocation3 [shape = 's32[1]{0}', space=sflag, size = 0x4, scoped, tag = 'scoped memory for cnn_lstm_forward.1']
    %11 = vsyncpa [#allocation3], 0
    // Predicated region
    $region2: #{cnn_lstm_forward.1} parent=1 // pred_check
      _
    $region3: #{cnn_lstm_forward.1} parent=1 // pred_check_branch
      %13 = sbr.rel (0) target = $region5
    $region4: #{cnn_lstm_forward.1} parent=1 // pred_region
      _
    $region5: #{cnn_lstm_forward.1} parent=1 // pred_fallthru
      _
    // Predicated region
    $region6: #{cnn_lstm_forward.1} parent=1 // pred_check
      _
    $region7: #{cnn_lstm_forward.1} parent=1 // pred_check_branch
      %15 = sbr.rel (0) target = $region9
    $region8: #{cnn_lstm_forward.1} parent=1 // pred_region
      _
    $region9: #{cnn_lstm_forward.1} parent=1 // pred_fallthru
      _
    // Predicated region
    $region10: #{cnn_lstm_forward.1} parent=1 // pred_check
      _
    $region11: #{cnn_lstm_forward.1} parent=1 // pred_check_branch
      %17 = sbr.rel (0) target = $region13
    $region12: #{cnn_lstm_forward.1} parent=1 // pred_region
      _
    $region13: #{cnn_lstm_forward.1} parent=1 // pred_fallthru
      _
    // Predicated region
    $region14: #{cnn_lstm_forward.1} parent=1 // pred_check
      _
    $region15: #{cnn_lstm_forward.1} parent=1 // pred_check_branch
      %19 = sbr.rel (0) target = $region17
    $region16: #{cnn_lstm_forward.1} parent=1 // pred_region
      _
    $region17: #{cnn_lstm_forward.1} parent=1 // pred_fallthru
      _
    // Predicated region
    $region18: #{cnn_lstm_forward.1} parent=1 // pred_check
      _
    $region19: #{cnn_lstm_forward.1} parent=1 // pred_check_branch
      %21 = sbr.rel (0) target = $region21
    $region20: #{cnn_lstm_forward.1} parent=1 // pred_region
      _
    $region21: #{cnn_lstm_forward.1} parent=1 // pred_fallthru
      _
    // Predicated region
    $region22: #{cnn_lstm_forward.1} parent=1 // pred_check
      _
    $region23: #{cnn_lstm_forward.1} parent=1 // pred_check_branch
      %23 = sbr.rel (0) target = $region25
    $region24: #{cnn_lstm_forward.1} parent=1 // pred_region
      _
    $region25: #{cnn_lstm_forward.1} parent=1 // pred_fallthru
      _
    %v24 = vld [vmem:[%s0] sm:$0xff]
    %v25 = vld [vmem:[%s0 + $0x8] sm:$0xff]
    %v26 = vld [vmem:[%s0 + $0x10] sm:$0xff]
    %v27 = vld [vmem:[%s0 + $0x18] sm:$0xff]
    %v28 = vld [vmem:[%s0 + $0x20] sm:$0xff]
    %v29 = vld [vmem:[%s0 + $0x28] sm:$0xff]
    %v30 = vld [vmem:[%s0 + $0x30] sm:$0xff]
    %v31 = vld [vmem:[%s0 + $0x38] sm:$0xff]
    %v32 = vld [vmem:[%s0 + $0x40] sm:$0xff]
    %v33 = vld [vmem:[%s0 + $0x48] sm:$0xff]
    %v34 = vld [vmem:[%s0 + $0x50] sm:$0xff]
    %v35 = vld [vmem:[%s0 + $0x58] sm:$0x3]
    %v36 = vld [vmem:[%s1] sm:$0xff]
    %v37 = vld [vmem:[%s1 + $0x8] sm:$0xff]
    %v38 = vld [vmem:[%s1 + $0x10] sm:$0xff]
    %v39 = vld [vmem:[%s1 + $0x18] sm:$0x1]
    %vm40 = vcmask 203776
    %v42 = vsel %vm40, %v24, 0
    %v45 = vsel %vm40, %v25, 0
    %v48 = vsel %vm40, %v26, 0
    %v51 = vsel %vm40, %v27, 0
    %v54 = vsel %vm40, %v28, 0
    %v57 = vsel %vm40, %v29, 0
    %v60 = vsel %vm40, %v30, 0
    %v63 = vsel %vm40, %v31, 0
    %v66 = vsel %vm40, %v32, 0
    %v69 = vsel %vm40, %v33, 0
    %v72 = vsel %vm40, %v34, 0
    %v75 = vsel %vm40, %v35, 0
    %vm77 = vcmask 1040384
    %v79 = vsel %vm77, %v39, 0
    %81 = vmatprep.subr.mxu0 0.0
    %82 = vmatpush1.msra.mxu0 0.0
    %83 = vmatprep.subr.mxu0 0.0
    %84 = vmatpush1.msra.mxu0 0.0
    %85 = vmatprep.subr.mxu0 0.0
    %86 = vmatpush1.msra.mxu0 0.0
    %87 = vmatprep.subr.mxu0 0.0
    %88 = vmatpush1.msra.mxu0 0.0
    %89 = vmatprep.subr.mxu0 0.0
    %90 = vmatpush1.msra.mxu0 0.0
    %91 = vmatprep.subr.mxu0 0.0
    %92 = vmatpush1.msra.mxu0 0.0
    %93 = vmatprep.subr.mxu0 0.0
    %94 = vmatpush1.msra.mxu0 0.0
    %95 = vmatprep.subr.mxu0 0.0
    %96 = vmatpush1.msra.mxu0 0.0
    %97 = vmatprep.subr.mxu0 0.0
    %98 = vmatpush1.msra.mxu0 0.0
    %99 = vmatprep.subr.mxu0 0.0
    %100 = vmatpush1.msra.mxu0 0.0
    %101 = vmatprep.subr.mxu0 0.0
    %102 = vmatpush1.msra.mxu0 0.0
    %103 = vmatprep.subr.mxu0 0.0
    %104 = vmatpush1.msra.mxu0 0.0
    %105 = vmatprep.subr.mxu0 0.0
    %106 = vmatpush1.msra.mxu0 %v79
    %107 = vmatprep.subr.mxu0 0.0
    %108 = vmatpush1.msra.mxu0 %v38
    %109 = vmatprep.subr.mxu0 0.0
    %110 = vmatpush1.msra.mxu0 %v37
    %111 = vmatprep.subr.mxu0 0.0
    %112 = vmatpush1.msra.mxu0 %v36
    %113 = vmatprep.subr.mxu0 0.0
    %114 = vmatpush2.msra.mxu0 0.0
    %115 = vmatprep.subr.mxu0 0.0
    %116 = vmatpush2.msra.mxu0 0.0
    %117 = vmatprep.subr.mxu0 0.0
    %118 = vmatpush2.msra.mxu0 0.0
    %119 = vmatprep.subr.mxu0 0.0
    %120 = vmatpush2.msra.mxu0 0.0
    %121 = vmatprep.subr.mxu0 0.0
    %122 = vmatpush2.msra.mxu0 0.0
    %123 = vmatprep.subr.mxu0 0.0
    %124 = vmatpush2.msra.mxu0 0.0
    %125 = vmatprep.subr.mxu0 0.0
    %126 = vmatpush2.msra.mxu0 0.0
    %127 = vmatprep.subr.mxu0 0.0
    %128 = vmatpush2.msra.mxu0 0.0
    %129 = vmatprep.subr.mxu0 0.0
    %130 = vmatpush2.msra.mxu0 0.0
    %131 = vmatprep.subr.mxu0 0.0
    %132 = vmatpush2.msra.mxu0 0.0
    %133 = vmatprep.subr.mxu0 0.0
    %134 = vmatpush2.msra.mxu0 0.0
    %135 = vmatprep.subr.mxu0 0.0
    %136 = vmatpush2.msra.mxu0 0.0
    %137 = vmatprep.subr.mxu0 0.0
    %138 = vmatpush2.msra.mxu0 0.0
    %139 = vmatprep.subr.mxu0 0.0
    %140 = vmatpush2.msra.mxu0 0.0
    %141 = vmatprep.subr.mxu0 0.0
    %142 = vmatpush2.msra.mxu0 0.0
    %143 = vmatprep.subr.mxu0 0.0
    %144 = vmatpush2.msra.mxu0 0.0
    %145 = vmatprep.mubr.f32.mxu0 0.0
    %146 = vmatmul.mubr.f32.gmra.mxu0 %v42
    %v147 = vpop.f32.mrf.mxu0
    %v148 = vadd.f32 0.0, %v147
    %v149 = vpop.f32.mrf.mxu0
    %150 = vmatprep.mubr.f32.mxu0 0.0
    %151 = vmatmul.mubr.f32.gmra.mxu0 %v45
    %v152 = vpop.f32.mrf.mxu0
    %v153 = vadd.f32 0.0, %v152
    %v154 = vpop.f32.mrf.mxu0
    %155 = vmatprep.mubr.f32.mxu0 0.0
    %156 = vmatmul.mubr.f32.gmra.mxu0 %v48
    %v157 = vpop.f32.mrf.mxu0
    %v158 = vadd.f32 0.0, %v157
    %v159 = vpop.f32.mrf.mxu0
    %160 = vmatprep.mubr.f32.mxu0 0.0
    %161 = vmatmul.mubr.f32.gmra.mxu0 %v51
    %v162 = vpop.f32.mrf.mxu0
    %v163 = vadd.f32 0.0, %v162
    %v164 = vpop.f32.mrf.mxu0
    %165 = vmatprep.mubr.f32.mxu0 0.0
    %166 = vmatmul.mubr.f32.gmra.mxu0 %v54
    %v167 = vpop.f32.mrf.mxu0
    %v168 = vadd.f32 0.0, %v167
    %v169 = vpop.f32.mrf.mxu0
    %170 = vmatprep.mubr.f32.mxu0 0.0
    %171 = vmatmul.mubr.f32.gmra.mxu0 %v57
    %v172 = vpop.f32.mrf.mxu0
    %v173 = vadd.f32 0.0, %v172
    %v174 = vpop.f32.mrf.mxu0
    %175 = vmatprep.mubr.f32.mxu0 0.0
    %176 = vmatmul.mubr.f32.gmra.mxu0 %v60
    %v177 = vpop.f32.mrf.mxu0
    %v178 = vadd.f32 0.0, %v177
    %v179 = vpop.f32.mrf.mxu0
    %180 = vmatprep.mubr.f32.mxu0 0.0
    %181 = vmatmul.mubr.f32.gmra.mxu0 %v63
    %v182 = vpop.f32.mrf.mxu0
    %v183 = vadd.f32 0.0, %v182
    %v184 = vpop.f32.mrf.mxu0
    %185 = vmatprep.mubr.f32.mxu0 0.0
    %186 = vmatmul.mubr.f32.gmra.mxu0 %v66
    %v187 = vpop.f32.mrf.mxu0
    %v188 = vadd.f32 0.0, %v187
    %v189 = vpop.f32.mrf.mxu0
    %190 = vmatprep.mubr.f32.mxu0 0.0
    %191 = vmatmul.mubr.f32.gmra.mxu0 %v69
    %v192 = vpop.f32.mrf.mxu0
    %v193 = vadd.f32 0.0, %v192
    %v194 = vpop.f32.mrf.mxu0
    %195 = vmatprep.mubr.f32.mxu0 0.0
    %196 = vmatmul.mubr.f32.gmra.mxu0 %v72
    %v197 = vpop.f32.mrf.mxu0
    %v198 = vadd.f32 0.0, %v197
    %v199 = vpop.f32.mrf.mxu0
    %200 = vmatprep.mubr.f32.mxu0 0.0
    %201 = vmatmul.mubr.f32.gmra.mxu0 %v75
    %v202 = vpop.f32.mrf.mxu0
    %v203 = vadd.f32 0.0, %v202
    %v204 = vpop.f32.mrf.mxu0
    %205 = vdwg.mxu0
    %v206 = vmax.f32 %v148, 0.0
    %v207 = vmax.f32 %v153, 0.0
    %v208 = vmax.f32 %v158, 0.0
    %v209 = vmax.f32 %v163, 0.0
    %v210 = vmax.f32 %v168, 0.0
    %v211 = vmax.f32 %v173, 0.0
    %v212 = vmax.f32 %v178, 0.0
    %v213 = vmax.f32 %v183, 0.0
    %v214 = vmax.f32 %v188, 0.0
    %v215 = vmax.f32 %v193, 0.0
    %v216 = vmax.f32 %v198, 0.0
    %v217 = vmax.f32 %v203, 0.0
    %v230 = vcombine.high %v206, %v206
    %v232 = vunpack.c.l.s4 1966171168
    %v233 = vunpack.c.0.s8 %v232
    %v234 = vlaneseq
    %v235 = vshrl.u32 %v234, 7
    %v236 = vsub.s32 %v233, %v235
    %v237 = vrot.slane %v206, %v236
    %v239 = vunpack.c.l.s4 1966171168
    %v240 = vunpack.c.0.s8 %v239
    %v241 = vlaneseq
    %v242 = vshrl.u32 %v241, 7
    %v243 = vsub.s32 %v240, %v242
    %v244 = vrot.slane %v230, %v243
    %v245 = vcombine.high %v237, %v237
    %v246 = vcombine.high %v244, %v244
    %v248 = vunpack.c.l.s4 1966171168
    %v249 = vunpack.c.0.s8 %v248
    %v250 = vlaneseq
    %v251 = vshrl.u32 %v250, 7
    %v252 = vsub.s32 %v249, %v251
    %v253 = vrot.slane %v237, %v252
    %v255 = vunpack.c.l.s4 1966171168
    %v256 = vunpack.c.0.s8 %v255
    %v257 = vlaneseq
    %v258 = vshrl.u32 %v257, 7
    %v259 = vsub.s32 %v256, %v258
    %v260 = vrot.slane %v244, %v259
    %v262 = vunpack.c.l.s4 1966171168
    %v263 = vunpack.c.0.s8 %v262
    %v264 = vlaneseq
    %v265 = vshrl.u32 %v264, 7
    %v266 = vsub.s32 %v263, %v265
    %v267 = vrot.slane %v245, %v266
    %v269 = vunpack.c.l.s4 1966171168
    %v270 = vunpack.c.0.s8 %v269
    %v271 = vlaneseq
    %v272 = vshrl.u32 %v271, 7
    %v273 = vsub.s32 %v270, %v272
    %v274 = vrot.slane %v246, %v273
    %v275 = vcombine.high %v253, %v253
    %v276 = vcombine.high %v260, %v260
    %v277 = vcombine.high %v267, %v267
    %v278 = vcombine.high %v274, %v274
    %v279 = vcombine.high %v207, %v207
    %v281 = vunpack.c.l.s4 1966171168
    %v282 = vunpack.c.0.s8 %v281
    %v283 = vlaneseq
    %v284 = vshrl.u32 %v283, 7
    %v285 = vsub.s32 %v282, %v284
    %v286 = vrot.slane %v207, %v285
    %v288 = vunpack.c.l.s4 1966171168
    %v289 = vunpack.c.0.s8 %v288
    %v290 = vlaneseq
    %v291 = vshrl.u32 %v290, 7
    %v292 = vsub.s32 %v289, %v291
    %v293 = vrot.slane %v279, %v292
    %v294 = vcombine.high %v286, %v286
    %v295 = vcombine.high %v293, %v293
    %v297 = vunpack.c.l.s4 1966171168
    %v298 = vunpack.c.0.s8 %v297
    %v299 = vlaneseq
    %v300 = vshrl.u32 %v299, 7
    %v301 = vsub.s32 %v298, %v300
    %v302 = vrot.slane %v286, %v301
    %v304 = vunpack.c.l.s4 1966171168
    %v305 = vunpack.c.0.s8 %v304
    %v306 = vlaneseq
    %v307 = vshrl.u32 %v306, 7
    %v308 = vsub.s32 %v305, %v307
    %v309 = vrot.slane %v293, %v308
    %v311 = vunpack.c.l.s4 1966171168
    %v312 = vunpack.c.0.s8 %v311
    %v313 = vlaneseq
    %v314 = vshrl.u32 %v313, 7
    %v315 = vsub.s32 %v312, %v314
    %v316 = vrot.slane %v294, %v315
    %v318 = vunpack.c.l.s4 1966171168
    %v319 = vunpack.c.0.s8 %v318
    %v320 = vlaneseq
    %v321 = vshrl.u32 %v320, 7
    %v322 = vsub.s32 %v319, %v321
    %v323 = vrot.slane %v295, %v322
    %v324 = vcombine.high %v302, %v302
    %v325 = vcombine.high %v309, %v309
    %v326 = vcombine.high %v316, %v316
    %v327 = vcombine.high %v323, %v323
    %v328 = vcombine.high %v208, %v208
    %v330 = vunpack.c.l.s4 1966171168
    %v331 = vunpack.c.0.s8 %v330
    %v332 = vlaneseq
    %v333 = vshrl.u32 %v332, 7
    %v334 = vsub.s32 %v331, %v333
    %v335 = vrot.slane %v208, %v334
    %v337 = vunpack.c.l.s4 1966171168
    %v338 = vunpack.c.0.s8 %v337
    %v339 = vlaneseq
    %v340 = vshrl.u32 %v339, 7
    %v341 = vsub.s32 %v338, %v340
    %v342 = vrot.slane %v328, %v341
    %v343 = vcombine.high %v335, %v335
    %v344 = vcombine.high %v342, %v342
    %v346 = vunpack.c.l.s4 1966171168
    %v347 = vunpack.c.0.s8 %v346
    %v348 = vlaneseq
    %v349 = vshrl.u32 %v348, 7
    %v350 = vsub.s32 %v347, %v349
    %v351 = vrot.slane %v335, %v350
    %v353 = vunpack.c.l.s4 1966171168
    %v354 = vunpack.c.0.s8 %v353
    %v355 = vlaneseq
    %v356 = vshrl.u32 %v355, 7
    %v357 = vsub.s32 %v354, %v356
    %v358 = vrot.slane %v342, %v357
    %v360 = vunpack.c.l.s4 1966171168
    %v361 = vunpack.c.0.s8 %v360
    %v362 = vlaneseq
    %v363 = vshrl.u32 %v362, 7
    %v364 = vsub.s32 %v361, %v363
    %v365 = vrot.slane %v343, %v364
    %v367 = vunpack.c.l.s4 1966171168
    %v368 = vunpack.c.0.s8 %v367
    %v369 = vlaneseq
    %v370 = vshrl.u32 %v369, 7
    %v371 = vsub.s32 %v368, %v370
    %v372 = vrot.slane %v344, %v371
    %v373 = vcombine.high %v351, %v351
    %v374 = vcombine.high %v358, %v358
    %v375 = vcombine.high %v365, %v365
    %v376 = vcombine.high %v372, %v372
    %v377 = vcombine.high %v209, %v209
    %v379 = vunpack.c.l.s4 1966171168
    %v380 = vunpack.c.0.s8 %v379
    %v381 = vlaneseq
    %v382 = vshrl.u32 %v381, 7
    %v383 = vsub.s32 %v380, %v382
    %v384 = vrot.slane %v209, %v383
    %v386 = vunpack.c.l.s4 1966171168
    %v387 = vunpack.c.0.s8 %v386
    %v388 = vlaneseq
    %v389 = vshrl.u32 %v388, 7
    %v390 = vsub.s32 %v387, %v389
    %v391 = vrot.slane %v377, %v390
    %v392 = vcombine.high %v384, %v384
    %v393 = vcombine.high %v391, %v391
    %v395 = vunpack.c.l.s4 1966171168
    %v396 = vunpack.c.0.s8 %v395
    %v397 = vlaneseq
    %v398 = vshrl.u32 %v397, 7
    %v399 = vsub.s32 %v396, %v398
    %v400 = vrot.slane %v384, %v399
    %v402 = vunpack.c.l.s4 1966171168
    %v403 = vunpack.c.0.s8 %v402
    %v404 = vlaneseq
    %v405 = vshrl.u32 %v404, 7
    %v406 = vsub.s32 %v403, %v405
    %v407 = vrot.slane %v391, %v406
    %v409 = vunpack.c.l.s4 1966171168
    %v410 = vunpack.c.0.s8 %v409
    %v411 = vlaneseq
    %v412 = vshrl.u32 %v411, 7
    %v413 = vsub.s32 %v410, %v412
    %v414 = vrot.slane %v392, %v413
    %v416 = vunpack.c.l.s4 1966171168
    %v417 = vunpack.c.0.s8 %v416
    %v418 = vlaneseq
    %v419 = vshrl.u32 %v418, 7
    %v420 = vsub.s32 %v417, %v419
    %v421 = vrot.slane %v393, %v420
    %v422 = vcombine.high %v400, %v400
    %v423 = vcombine.high %v407, %v407
    %v424 = vcombine.high %v414, %v414
    %v425 = vcombine.high %v421, %v421
    %v426 = vcombine.high %v210, %v210
    %v428 = vunpack.c.l.s4 1966171168
    %v429 = vunpack.c.0.s8 %v428
    %v430 = vlaneseq
    %v431 = vshrl.u32 %v430, 7
    %v432 = vsub.s32 %v429, %v431
    %v433 = vrot.slane %v210, %v432
    %v435 = vunpack.c.l.s4 1966171168
    %v436 = vunpack.c.0.s8 %v435
    %v437 = vlaneseq
    %v438 = vshrl.u32 %v437, 7
    %v439 = vsub.s32 %v436, %v438
    %v440 = vrot.slane %v426, %v439
    %v441 = vcombine.high %v433, %v433
    %v442 = vcombine.high %v440, %v440
    %v444 = vunpack.c.l.s4 1966171168
    %v445 = vunpack.c.0.s8 %v444
    %v446 = vlaneseq
    %v447 = vshrl.u32 %v446, 7
    %v448 = vsub.s32 %v445, %v447
    %v449 = vrot.slane %v433, %v448
    %v451 = vunpack.c.l.s4 1966171168
    %v452 = vunpack.c.0.s8 %v451
    %v453 = vlaneseq
    %v454 = vshrl.u32 %v453, 7
    %v455 = vsub.s32 %v452, %v454
    %v456 = vrot.slane %v440, %v455
    %v458 = vunpack.c.l.s4 1966171168
    %v459 = vunpack.c.0.s8 %v458
    %v460 = vlaneseq
    %v461 = vshrl.u32 %v460, 7
    %v462 = vsub.s32 %v459, %v461
    %v463 = vrot.slane %v441, %v462
    %v465 = vunpack.c.l.s4 1966171168
    %v466 = vunpack.c.0.s8 %v465
    %v467 = vlaneseq
    %v468 = vshrl.u32 %v467, 7
    %v469 = vsub.s32 %v466, %v468
    %v470 = vrot.slane %v442, %v469
    %v471 = vcombine.high %v449, %v449
    %v472 = vcombine.high %v456, %v456
    %v473 = vcombine.high %v463, %v463
    %v474 = vcombine.high %v470, %v470
    %v475 = vcombine.high %v211, %v211
    %v477 = vunpack.c.l.s4 1966171168
    %v478 = vunpack.c.0.s8 %v477
    %v479 = vlaneseq
    %v480 = vshrl.u32 %v479, 7
    %v481 = vsub.s32 %v478, %v480
    %v482 = vrot.slane %v211, %v481
    %v484 = vunpack.c.l.s4 1966171168
    %v485 = vunpack.c.0.s8 %v484
    %v486 = vlaneseq
    %v487 = vshrl.u32 %v486, 7
    %v488 = vsub.s32 %v485, %v487
    %v489 = vrot.slane %v475, %v488
    %v490 = vcombine.high %v482, %v482
    %v491 = vcombine.high %v489, %v489
    %v493 = vunpack.c.l.s4 1966171168
    %v494 = vunpack.c.0.s8 %v493
    %v495 = vlaneseq
    %v496 = vshrl.u32 %v495, 7
    %v497 = vsub.s32 %v494, %v496
    %v498 = vrot.slane %v482, %v497
    %v500 = vunpack.c.l.s4 1966171168
    %v501 = vunpack.c.0.s8 %v500
    %v502 = vlaneseq
    %v503 = vshrl.u32 %v502, 7
    %v504 = vsub.s32 %v501, %v503
    %v505 = vrot.slane %v489, %v504
    %v507 = vunpack.c.l.s4 1966171168
    %v508 = vunpack.c.0.s8 %v507
    %v509 = vlaneseq
    %v510 = vshrl.u32 %v509, 7
    %v511 = vsub.s32 %v508, %v510
    %v512 = vrot.slane %v490, %v511
    %v514 = vunpack.c.l.s4 1966171168
    %v515 = vunpack.c.0.s8 %v514
    %v516 = vlaneseq
    %v517 = vshrl.u32 %v516, 7
    %v518 = vsub.s32 %v515, %v517
    %v519 = vrot.slane %v491, %v518
    %v520 = vcombine.high %v498, %v498
    %v521 = vcombine.high %v505, %v505
    %v522 = vcombine.high %v512, %v512
    %v523 = vcombine.high %v519, %v519
    %v524 = vcombine.high %v212, %v212
    %v526 = vunpack.c.l.s4 1966171168
    %v527 = vunpack.c.0.s8 %v526
    %v528 = vlaneseq
    %v529 = vshrl.u32 %v528, 7
    %v530 = vsub.s32 %v527, %v529
    %v531 = vrot.slane %v212, %v530
    %v533 = vunpack.c.l.s4 1966171168
    %v534 = vunpack.c.0.s8 %v533
    %v535 = vlaneseq
    %v536 = vshrl.u32 %v535, 7
    %v537 = vsub.s32 %v534, %v536
    %v538 = vrot.slane %v524, %v537
    %v539 = vcombine.high %v531, %v531
    %v540 = vcombine.high %v538, %v538
    %v542 = vunpack.c.l.s4 1966171168
    %v543 = vunpack.c.0.s8 %v542
    %v544 = vlaneseq
    %v545 = vshrl.u32 %v544, 7
    %v546 = vsub.s32 %v543, %v545
    %v547 = vrot.slane %v531, %v546
    %v549 = vunpack.c.l.s4 1966171168
    %v550 = vunpack.c.0.s8 %v549
    %v551 = vlaneseq
    %v552 = vshrl.u32 %v551, 7
    %v553 = vsub.s32 %v550, %v552
    %v554 = vrot.slane %v538, %v553
    %v556 = vunpack.c.l.s4 1966171168
    %v557 = vunpack.c.0.s8 %v556
    %v558 = vlaneseq
    %v559 = vshrl.u32 %v558, 7
    %v560 = vsub.s32 %v557, %v559
    %v561 = vrot.slane %v539, %v560
    %v563 = vunpack.c.l.s4 1966171168
    %v564 = vunpack.c.0.s8 %v563
    %v565 = vlaneseq
    %v566 = vshrl.u32 %v565, 7
    %v567 = vsub.s32 %v564, %v566
    %v568 = vrot.slane %v540, %v567
    %v569 = vcombine.high %v547, %v547
    %v570 = vcombine.high %v554, %v554
    %v571 = vcombine.high %v561, %v561
    %v572 = vcombine.high %v568, %v568
    %v573 = vcombine.high %v213, %v213
    %v575 = vunpack.c.l.s4 1966171168
    %v576 = vunpack.c.0.s8 %v575
    %v577 = vlaneseq
    %v578 = vshrl.u32 %v577, 7
    %v579 = vsub.s32 %v576, %v578
    %v580 = vrot.slane %v213, %v579
    %v582 = vunpack.c.l.s4 1966171168
    %v583 = vunpack.c.0.s8 %v582
    %v584 = vlaneseq
    %v585 = vshrl.u32 %v584, 7
    %v586 = vsub.s32 %v583, %v585
    %v587 = vrot.slane %v573, %v586
    %v588 = vcombine.high %v580, %v580
    %v589 = vcombine.high %v587, %v587
    %v591 = vunpack.c.l.s4 1966171168
    %v592 = vunpack.c.0.s8 %v591
    %v593 = vlaneseq
    %v594 = vshrl.u32 %v593, 7
    %v595 = vsub.s32 %v592, %v594
    %v596 = vrot.slane %v580, %v595
    %v598 = vunpack.c.l.s4 1966171168
    %v599 = vunpack.c.0.s8 %v598
    %v600 = vlaneseq
    %v601 = vshrl.u32 %v600, 7
    %v602 = vsub.s32 %v599, %v601
    %v603 = vrot.slane %v587, %v602
    %v605 = vunpack.c.l.s4 1966171168
    %v606 = vunpack.c.0.s8 %v605
    %v607 = vlaneseq
    %v608 = vshrl.u32 %v607, 7
    %v609 = vsub.s32 %v606, %v608
    %v610 = vrot.slane %v588, %v609
    %v612 = vunpack.c.l.s4 1966171168
    %v613 = vunpack.c.0.s8 %v612
    %v614 = vlaneseq
    %v615 = vshrl.u32 %v614, 7
    %v616 = vsub.s32 %v613, %v615
    %v617 = vrot.slane %v589, %v616
    %v618 = vcombine.high %v596, %v596
    %v619 = vcombine.high %v603, %v603
    %v620 = vcombine.high %v610, %v610
    %v621 = vcombine.high %v617, %v617
    %v622 = vcombine.high %v214, %v214
    %v624 = vunpack.c.l.s4 1966171168
    %v625 = vunpack.c.0.s8 %v624
    %v626 = vlaneseq
    %v627 = vshrl.u32 %v626, 7
    %v628 = vsub.s32 %v625, %v627
    %v629 = vrot.slane %v214, %v628
    %v631 = vunpack.c.l.s4 1966171168
    %v632 = vunpack.c.0.s8 %v631
    %v633 = vlaneseq
    %v634 = vshrl.u32 %v633, 7
    %v635 = vsub.s32 %v632, %v634
    %v636 = vrot.slane %v622, %v635
    %v637 = vcombine.high %v629, %v629
    %v638 = vcombine.high %v636, %v636
    %v640 = vunpack.c.l.s4 1966171168
    %v641 = vunpack.c.0.s8 %v640
    %v642 = vlaneseq
    %v643 = vshrl.u32 %v642, 7
    %v644 = vsub.s32 %v641, %v643
    %v645 = vrot.slane %v629, %v644
    %v647 = vunpack.c.l.s4 1966171168
    %v648 = vunpack.c.0.s8 %v647
    %v649 = vlaneseq
    %v650 = vshrl.u32 %v649, 7
    %v651 = vsub.s32 %v648, %v650
    %v652 = vrot.slane %v636, %v651
    %v654 = vunpack.c.l.s4 1966171168
    %v655 = vunpack.c.0.s8 %v654
    %v656 = vlaneseq
    %v657 = vshrl.u32 %v656, 7
    %v658 = vsub.s32 %v655, %v657
    %v659 = vrot.slane %v637, %v658
    %v661 = vunpack.c.l.s4 1966171168
    %v662 = vunpack.c.0.s8 %v661
    %v663 = vlaneseq
    %v664 = vshrl.u32 %v663, 7
    %v665 = vsub.s32 %v662, %v664
    %v666 = vrot.slane %v638, %v665
    %v667 = vcombine.high %v645, %v645
    %v668 = vcombine.high %v652, %v652
    %v669 = vcombine.high %v659, %v659
    %v670 = vcombine.high %v666, %v666
    %v671 = vcombine.high %v215, %v215
    %v673 = vunpack.c.l.s4 1966171168
    %v674 = vunpack.c.0.s8 %v673
    %v675 = vlaneseq
    %v676 = vshrl.u32 %v675, 7
    %v677 = vsub.s32 %v674, %v676
    %v678 = vrot.slane %v215, %v677
    %v680 = vunpack.c.l.s4 1966171168
    %v681 = vunpack.c.0.s8 %v680
    %v682 = vlaneseq
    %v683 = vshrl.u32 %v682, 7
    %v684 = vsub.s32 %v681, %v683
    %v685 = vrot.slane %v671, %v684
    %v686 = vcombine.high %v678, %v678
    %v687 = vcombine.high %v685, %v685
    %v689 = vunpack.c.l.s4 1966171168
    %v690 = vunpack.c.0.s8 %v689
    %v691 = vlaneseq
    %v692 = vshrl.u32 %v691, 7
    %v693 = vsub.s32 %v690, %v692
    %v694 = vrot.slane %v678, %v693
    %v696 = vunpack.c.l.s4 1966171168
    %v697 = vunpack.c.0.s8 %v696
    %v698 = vlaneseq
    %v699 = vshrl.u32 %v698, 7
    %v700 = vsub.s32 %v697, %v699
    %v701 = vrot.slane %v685, %v700
    %v703 = vunpack.c.l.s4 1966171168
    %v704 = vunpack.c.0.s8 %v703
    %v705 = vlaneseq
    %v706 = vshrl.u32 %v705, 7
    %v707 = vsub.s32 %v704, %v706
    %v708 = vrot.slane %v686, %v707
    %v710 = vunpack.c.l.s4 1966171168
    %v711 = vunpack.c.0.s8 %v710
    %v712 = vlaneseq
    %v713 = vshrl.u32 %v712, 7
    %v714 = vsub.s32 %v711, %v713
    %v715 = vrot.slane %v687, %v714
    %v716 = vcombine.high %v694, %v694
    %v717 = vcombine.high %v701, %v701
    %v718 = vcombine.high %v708, %v708
    %v719 = vcombine.high %v715, %v715
    %v720 = vcombine.high %v216, %v216
    %v722 = vunpack.c.l.s4 1966171168
    %v723 = vunpack.c.0.s8 %v722
    %v724 = vlaneseq
    %v725 = vshrl.u32 %v724, 7
    %v726 = vsub.s32 %v723, %v725
    %v727 = vrot.slane %v216, %v726
    %v729 = vunpack.c.l.s4 1966171168
    %v730 = vunpack.c.0.s8 %v729
    %v731 = vlaneseq
    %v732 = vshrl.u32 %v731, 7
    %v733 = vsub.s32 %v730, %v732
    %v734 = vrot.slane %v720, %v733
    %v735 = vcombine.high %v727, %v727
    %v736 = vcombine.high %v734, %v734
    %v738 = vunpack.c.l.s4 1966171168
    %v739 = vunpack.c.0.s8 %v738
    %v740 = vlaneseq
    %v741 = vshrl.u32 %v740, 7
    %v742 = vsub.s32 %v739, %v741
    %v743 = vrot.slane %v727, %v742
    %v745 = vunpack.c.l.s4 1966171168
    %v746 = vunpack.c.0.s8 %v745
    %v747 = vlaneseq
    %v748 = vshrl.u32 %v747, 7
    %v749 = vsub.s32 %v746, %v748
    %v750 = vrot.slane %v734, %v749
    %v752 = vunpack.c.l.s4 1966171168
    %v753 = vunpack.c.0.s8 %v752
    %v754 = vlaneseq
    %v755 = vshrl.u32 %v754, 7
    %v756 = vsub.s32 %v753, %v755
    %v757 = vrot.slane %v735, %v756
    %v759 = vunpack.c.l.s4 1966171168
    %v760 = vunpack.c.0.s8 %v759
    %v761 = vlaneseq
    %v762 = vshrl.u32 %v761, 7
    %v763 = vsub.s32 %v760, %v762
    %v764 = vrot.slane %v736, %v763
    %v765 = vcombine.high %v743, %v743
    %v766 = vcombine.high %v750, %v750
    %v767 = vcombine.high %v757, %v757
    %v768 = vcombine.high %v764, %v764
    %v770 = vunpack.c.l.s4 1966171168
    %v771 = vunpack.c.0.s8 %v770
    %v772 = vlaneseq
    %v773 = vshrl.u32 %v772, 7
    %v774 = vsub.s32 %v771, %v773
    %v775 = vrot.slane %v217, %v774
    %v776 = vcombine.high %v775, %v775
    %v778 = vunpack.c.l.s4 1966171168
    %v779 = vunpack.c.0.s8 %v778
    %v780 = vlaneseq
    %v781 = vshrl.u32 %v780, 7
    %v782 = vsub.s32 %v779, %v781
    %v783 = vrot.slane %v775, %v782
    %v785 = vunpack.c.l.s4 1966171168
    %v786 = vunpack.c.0.s8 %v785
    %v787 = vlaneseq
    %v788 = vshrl.u32 %v787, 7
    %v789 = vsub.s32 %v786, %v788
    %v790 = vrot.slane %v776, %v789
    %v791 = vcombine.low %v253, %v267
    %v792 = vcombine.low %v275, %v277
    %v793 = vcombine.low %v260, %v274
    %v794 = vcombine.low %v276, %v278
    %v796 = vunpack.c.l.s4 1966171168
    %v797 = vunpack.c.0.s8 %v796
    %v798 = vlaneseq
    %v799 = vshrl.u32 %v798, 7
    %v800 = vsub.s32 %v797, %v799
    %v801 = vrot.slane %v791, %v800
    %v803 = vunpack.c.l.s4 1966171168
    %v804 = vunpack.c.0.s8 %v803
    %v805 = vlaneseq
    %v806 = vshrl.u32 %v805, 7
    %v807 = vsub.s32 %v804, %v806
    %v808 = vrot.slane %v792, %v807
    %v810 = vunpack.c.l.s4 1966171168
    %v811 = vunpack.c.0.s8 %v810
    %v812 = vlaneseq
    %v813 = vshrl.u32 %v812, 7
    %v814 = vsub.s32 %v811, %v813
    %v815 = vrot.slane %v793, %v814
    %v817 = vunpack.c.l.s4 1966171168
    %v818 = vunpack.c.0.s8 %v817
    %v819 = vlaneseq
    %v820 = vshrl.u32 %v819, 7
    %v821 = vsub.s32 %v818, %v820
    %v822 = vrot.slane %v794, %v821
    %v823 = vcombine.low %v801, %v808
    %v824 = vcombine.low %v815, %v822
    %v826 = vunpack.c.l.s4 1966171168
    %v827 = vunpack.c.0.s8 %v826
    %v828 = vlaneseq
    %v829 = vshrl.u32 %v828, 7
    %v830 = vsub.s32 %v827, %v829
    %v831 = vrot.slane %v823, %v830
    %v833 = vunpack.c.l.s4 1966171168
    %v834 = vunpack.c.0.s8 %v833
    %v835 = vlaneseq
    %v836 = vshrl.u32 %v835, 7
    %v837 = vsub.s32 %v834, %v836
    %v838 = vrot.slane %v824, %v837
    %v839 = vcombine.low %v831, %v838
    %v841 = vunpack.c.l.s4 1966171168
    %v842 = vunpack.c.0.s8 %v841
    %v843 = vlaneseq
    %v844 = vshrl.u32 %v843, 7
    %v845 = vsub.s32 %v842, %v844
    %v846 = vrot.slane %v302, %v845
    %v848 = vunpack.c.l.s4 1966171168
    %v849 = vunpack.c.0.s8 %v848
    %v850 = vlaneseq
    %v851 = vshrl.u32 %v850, 7
    %v852 = vsub.s32 %v849, %v851
    %v853 = vrot.slane %v846, %v852
    %v854 = vcombine.low %v316, %v324
    %v855 = vcombine.low %v326, %v309
    %v856 = vcombine.low %v323, %v325
    %v857 = vcombine.low %v327, %v351
    %v859 = vunpack.c.l.s4 1966171168
    %v860 = vunpack.c.0.s8 %v859
    %v861 = vlaneseq
    %v862 = vshrl.u32 %v861, 7
    %v863 = vsub.s32 %v860, %v862
    %v864 = vrot.slane %v854, %v863
    %v866 = vunpack.c.l.s4 1966171168
    %v867 = vunpack.c.0.s8 %v866
    %v868 = vlaneseq
    %v869 = vshrl.u32 %v868, 7
    %v870 = vsub.s32 %v867, %v869
    %v871 = vrot.slane %v855, %v870
    %v873 = vunpack.c.l.s4 1966171168
    %v874 = vunpack.c.0.s8 %v873
    %v875 = vlaneseq
    %v876 = vshrl.u32 %v875, 7
    %v877 = vsub.s32 %v874, %v876
    %v878 = vrot.slane %v856, %v877
    %v880 = vunpack.c.l.s4 1966171168
    %v881 = vunpack.c.0.s8 %v880
    %v882 = vlaneseq
    %v883 = vshrl.u32 %v882, 7
    %v884 = vsub.s32 %v881, %v883
    %v885 = vrot.slane %v857, %v884
    %v886 = vcombine.low %v864, %v871
    %v887 = vcombine.low %v878, %v885
    %v889 = vunpack.c.l.s4 1966171168
    %v890 = vunpack.c.0.s8 %v889
    %v891 = vlaneseq
    %v892 = vshrl.u32 %v891, 7
    %v893 = vsub.s32 %v890, %v892
    %v894 = vrot.slane %v886, %v893
    %v896 = vunpack.c.l.s4 1966171168
    %v897 = vunpack.c.0.s8 %v896
    %v898 = vlaneseq
    %v899 = vshrl.u32 %v898, 7
    %v900 = vsub.s32 %v897, %v899
    %v901 = vrot.slane %v887, %v900
    %v902 = vcombine.low %v894, %v901
    %v904 = vunpack.c.l.s4 1966171168
    %v905 = vunpack.c.0.s8 %v904
    %v906 = vlaneseq
    %v907 = vshrl.u32 %v906, 7
    %v908 = vsub.s32 %v905, %v907
    %v909 = vrot.slane %v365, %v908
    %v911 = vunpack.c.l.s4 1966171168
    %v912 = vunpack.c.0.s8 %v911
    %v913 = vlaneseq
    %v914 = vshrl.u32 %v913, 7
    %v915 = vsub.s32 %v912, %v914
    %v916 = vrot.slane %v909, %v915
    %v917 = vcombine.low %v373, %v375
    %v918 = vcombine.low %v358, %v372
    %v919 = vcombine.low %v374, %v376
    %v920 = vcombine.low %v400, %v414
    %v922 = vunpack.c.l.s4 1966171168
    %v923 = vunpack.c.0.s8 %v922
    %v924 = vlaneseq
    %v925 = vshrl.u32 %v924, 7
    %v926 = vsub.s32 %v923, %v925
    %v927 = vrot.slane %v917, %v926
    %v929 = vunpack.c.l.s4 1966171168
    %v930 = vunpack.c.0.s8 %v929
    %v931 = vlaneseq
    %v932 = vshrl.u32 %v931, 7
    %v933 = vsub.s32 %v930, %v932
    %v934 = vrot.slane %v918, %v933
    %v936 = vunpack.c.l.s4 1966171168
    %v937 = vunpack.c.0.s8 %v936
    %v938 = vlaneseq
    %v939 = vshrl.u32 %v938, 7
    %v940 = vsub.s32 %v937, %v939
    %v941 = vrot.slane %v919, %v940
    %v943 = vunpack.c.l.s4 1966171168
    %v944 = vunpack.c.0.s8 %v943
    %v945 = vlaneseq
    %v946 = vshrl.u32 %v945, 7
    %v947 = vsub.s32 %v944, %v946
    %v948 = vrot.slane %v920, %v947
    %v949 = vcombine.low %v927, %v934
    %v950 = vcombine.low %v941, %v948
    %v952 = vunpack.c.l.s4 1966171168
    %v953 = vunpack.c.0.s8 %v952
    %v954 = vlaneseq
    %v955 = vshrl.u32 %v954, 7
    %v956 = vsub.s32 %v953, %v955
    %v957 = vrot.slane %v949, %v956
    %v959 = vunpack.c.l.s4 1966171168
    %v960 = vunpack.c.0.s8 %v959
    %v961 = vlaneseq
    %v962 = vshrl.u32 %v961, 7
    %v963 = vsub.s32 %v960, %v962
    %v964 = vrot.slane %v950, %v963
    %v965 = vcombine.low %v957, %v964
    %v967 = vunpack.c.l.s4 1966171168
    %v968 = vunpack.c.0.s8 %v967
    %v969 = vlaneseq
    %v970 = vshrl.u32 %v969, 7
    %v971 = vsub.s32 %v968, %v970
    %v972 = vrot.slane %v422, %v971
    %v974 = vunpack.c.l.s4 1966171168
    %v975 = vunpack.c.0.s8 %v974
    %v976 = vlaneseq
    %v977 = vshrl.u32 %v976, 7
    %v978 = vsub.s32 %v975, %v977
    %v979 = vrot.slane %v972, %v978
    %v980 = vcombine.low %v424, %v407
    %v981 = vcombine.low %v421, %v423
    %v982 = vcombine.low %v425, %v449
    %v983 = vcombine.low %v463, %v471
    %v985 = vunpack.c.l.s4 1966171168
    %v986 = vunpack.c.0.s8 %v985
    %v987 = vlaneseq
    %v988 = vshrl.u32 %v987, 7
    %v989 = vsub.s32 %v986, %v988
    %v990 = vrot.slane %v980, %v989
    %v992 = vunpack.c.l.s4 1966171168
    %v993 = vunpack.c.0.s8 %v992
    %v994 = vlaneseq
    %v995 = vshrl.u32 %v994, 7
    %v996 = vsub.s32 %v993, %v995
    %v997 = vrot.slane %v981, %v996
    %v999 = vunpack.c.l.s4 1966171168
    %v1000 = vunpack.c.0.s8 %v999
    %v1001 = vlaneseq
    %v1002 = vshrl.u32 %v1001, 7
    %v1003 = vsub.s32 %v1000, %v1002
    %v1004 = vrot.slane %v982, %v1003
    %v1006 = vunpack.c.l.s4 1966171168
    %v1007 = vunpack.c.0.s8 %v1006
    %v1008 = vlaneseq
    %v1009 = vshrl.u32 %v1008, 7
    %v1010 = vsub.s32 %v1007, %v1009
    %v1011 = vrot.slane %v983, %v1010
    %v1012 = vcombine.low %v990, %v997
    %v1013 = vcombine.low %v1004, %v1011
    %v1015 = vunpack.c.l.s4 1966171168
    %v1016 = vunpack.c.0.s8 %v1015
    %v1017 = vlaneseq
    %v1018 = vshrl.u32 %v1017, 7
    %v1019 = vsub.s32 %v1016, %v1018
    %v1020 = vrot.slane %v1012, %v1019
    %v1022 = vunpack.c.l.s4 1966171168
    %v1023 = vunpack.c.0.s8 %v1022
    %v1024 = vlaneseq
    %v1025 = vshrl.u32 %v1024, 7
    %v1026 = vsub.s32 %v1023, %v1025
    %v1027 = vrot.slane %v1013, %v1026
    %v1028 = vcombine.low %v1020, %v1027
    %v1030 = vunpack.c.l.s4 1966171168
    %v1031 = vunpack.c.0.s8 %v1030
    %v1032 = vlaneseq
    %v1033 = vshrl.u32 %v1032, 7
    %v1034 = vsub.s32 %v1031, %v1033
    %v1035 = vrot.slane %v473, %v1034
    %v1037 = vunpack.c.l.s4 1966171168
    %v1038 = vunpack.c.0.s8 %v1037
    %v1039 = vlaneseq
    %v1040 = vshrl.u32 %v1039, 7
    %v1041 = vsub.s32 %v1038, %v1040
    %v1042 = vrot.slane %v1035, %v1041
    %v1043 = vcombine.low %v456, %v470
    %v1044 = vcombine.low %v472, %v474
    %v1045 = vcombine.low %v498, %v512
    %v1046 = vcombine.low %v520, %v522
    %v1048 = vunpack.c.l.s4 1966171168
    %v1049 = vunpack.c.0.s8 %v1048
    %v1050 = vlaneseq
    %v1051 = vshrl.u32 %v1050, 7
    %v1052 = vsub.s32 %v1049, %v1051
    %v1053 = vrot.slane %v1043, %v1052
    %v1055 = vunpack.c.l.s4 1966171168
    %v1056 = vunpack.c.0.s8 %v1055
    %v1057 = vlaneseq
    %v1058 = vshrl.u32 %v1057, 7
    %v1059 = vsub.s32 %v1056, %v1058
    %v1060 = vrot.slane %v1044, %v1059
    %v1062 = vunpack.c.l.s4 1966171168
    %v1063 = vunpack.c.0.s8 %v1062
    %v1064 = vlaneseq
    %v1065 = vshrl.u32 %v1064, 7
    %v1066 = vsub.s32 %v1063, %v1065
    %v1067 = vrot.slane %v1045, %v1066
    %v1069 = vunpack.c.l.s4 1966171168
    %v1070 = vunpack.c.0.s8 %v1069
    %v1071 = vlaneseq
    %v1072 = vshrl.u32 %v1071, 7
    %v1073 = vsub.s32 %v1070, %v1072
    %v1074 = vrot.slane %v1046, %v1073
    %v1075 = vcombine.low %v1053, %v1060
    %v1076 = vcombine.low %v1067, %v1074
    %v1078 = vunpack.c.l.s4 1966171168
    %v1079 = vunpack.c.0.s8 %v1078
    %v1080 = vlaneseq
    %v1081 = vshrl.u32 %v1080, 7
    %v1082 = vsub.s32 %v1079, %v1081
    %v1083 = vrot.slane %v1075, %v1082
    %v1085 = vunpack.c.l.s4 1966171168
    %v1086 = vunpack.c.0.s8 %v1085
    %v1087 = vlaneseq
    %v1088 = vshrl.u32 %v1087, 7
    %v1089 = vsub.s32 %v1086, %v1088
    %v1090 = vrot.slane %v1076, %v1089
    %v1091 = vcombine.low %v1083, %v1090
    %v1093 = vunpack.c.l.s4 1966171168
    %v1094 = vunpack.c.0.s8 %v1093
    %v1095 = vlaneseq
    %v1096 = vshrl.u32 %v1095, 7
    %v1097 = vsub.s32 %v1094, %v1096
    %v1098 = vrot.slane %v505, %v1097
    %v1100 = vunpack.c.l.s4 1966171168
    %v1101 = vunpack.c.0.s8 %v1100
    %v1102 = vlaneseq
    %v1103 = vshrl.u32 %v1102, 7
    %v1104 = vsub.s32 %v1101, %v1103
    %v1105 = vrot.slane %v1098, %v1104
    %v1106 = vcombine.low %v519, %v521
    %v1107 = vcombine.low %v523, %v547
    %v1108 = vcombine.low %v561, %v569
    %v1109 = vcombine.low %v571, %v554
    %v1111 = vunpack.c.l.s4 1966171168
    %v1112 = vunpack.c.0.s8 %v1111
    %v1113 = vlaneseq
    %v1114 = vshrl.u32 %v1113, 7
    %v1115 = vsub.s32 %v1112, %v1114
    %v1116 = vrot.slane %v1106, %v1115
    %v1118 = vunpack.c.l.s4 1966171168
    %v1119 = vunpack.c.0.s8 %v1118
    %v1120 = vlaneseq
    %v1121 = vshrl.u32 %v1120, 7
    %v1122 = vsub.s32 %v1119, %v1121
    %v1123 = vrot.slane %v1107, %v1122
    %v1125 = vunpack.c.l.s4 1966171168
    %v1126 = vunpack.c.0.s8 %v1125
    %v1127 = vlaneseq
    %v1128 = vshrl.u32 %v1127, 7
    %v1129 = vsub.s32 %v1126, %v1128
    %v1130 = vrot.slane %v1108, %v1129
    %v1132 = vunpack.c.l.s4 1966171168
    %v1133 = vunpack.c.0.s8 %v1132
    %v1134 = vlaneseq
    %v1135 = vshrl.u32 %v1134, 7
    %v1136 = vsub.s32 %v1133, %v1135
    %v1137 = vrot.slane %v1109, %v1136
    %v1138 = vcombine.low %v1116, %v1123
    %v1139 = vcombine.low %v1130, %v1137
    %v1141 = vunpack.c.l.s4 1966171168
    %v1142 = vunpack.c.0.s8 %v1141
    %v1143 = vlaneseq
    %v1144 = vshrl.u32 %v1143, 7
    %v1145 = vsub.s32 %v1142, %v1144
    %v1146 = vrot.slane %v1138, %v1145
    %v1148 = vunpack.c.l.s4 1966171168
    %v1149 = vunpack.c.0.s8 %v1148
    %v1150 = vlaneseq
    %v1151 = vshrl.u32 %v1150, 7
    %v1152 = vsub.s32 %v1149, %v1151
    %v1153 = vrot.slane %v1139, %v1152
    %v1154 = vcombine.low %v1146, %v1153
    %v1156 = vunpack.c.l.s4 1966171168
    %v1157 = vunpack.c.0.s8 %v1156
    %v1158 = vlaneseq
    %v1159 = vshrl.u32 %v1158, 7
    %v1160 = vsub.s32 %v1157, %v1159
    %v1161 = vrot.slane %v568, %v1160
    %v1163 = vunpack.c.l.s4 1966171168
    %v1164 = vunpack.c.0.s8 %v1163
    %v1165 = vlaneseq
    %v1166 = vshrl.u32 %v1165, 7
    %v1167 = vsub.s32 %v1164, %v1166
    %v1168 = vrot.slane %v1161, %v1167
    %v1169 = vcombine.low %v570, %v572
    %v1170 = vcombine.low %v596, %v610
    %v1171 = vcombine.low %v618, %v620
    %v1172 = vcombine.low %v603, %v617
    %v1174 = vunpack.c.l.s4 1966171168
    %v1175 = vunpack.c.0.s8 %v1174
    %v1176 = vlaneseq
    %v1177 = vshrl.u32 %v1176, 7
    %v1178 = vsub.s32 %v1175, %v1177
    %v1179 = vrot.slane %v1169, %v1178
    %v1181 = vunpack.c.l.s4 1966171168
    %v1182 = vunpack.c.0.s8 %v1181
    %v1183 = vlaneseq
    %v1184 = vshrl.u32 %v1183, 7
    %v1185 = vsub.s32 %v1182, %v1184
    %v1186 = vrot.slane %v1170, %v1185
    %v1188 = vunpack.c.l.s4 1966171168
    %v1189 = vunpack.c.0.s8 %v1188
    %v1190 = vlaneseq
    %v1191 = vshrl.u32 %v1190, 7
    %v1192 = vsub.s32 %v1189, %v1191
    %v1193 = vrot.slane %v1171, %v1192
    %v1195 = vunpack.c.l.s4 1966171168
    %v1196 = vunpack.c.0.s8 %v1195
    %v1197 = vlaneseq
    %v1198 = vshrl.u32 %v1197, 7
    %v1199 = vsub.s32 %v1196, %v1198
    %v1200 = vrot.slane %v1172, %v1199
    %v1201 = vcombine.low %v1179, %v1186
    %v1202 = vcombine.low %v1193, %v1200
    %v1204 = vunpack.c.l.s4 1966171168
    %v1205 = vunpack.c.0.s8 %v1204
    %v1206 = vlaneseq
    %v1207 = vshrl.u32 %v1206, 7
    %v1208 = vsub.s32 %v1205, %v1207
    %v1209 = vrot.slane %v1201, %v1208
    %v1211 = vunpack.c.l.s4 1966171168
    %v1212 = vunpack.c.0.s8 %v1211
    %v1213 = vlaneseq
    %v1214 = vshrl.u32 %v1213, 7
    %v1215 = vsub.s32 %v1212, %v1214
    %v1216 = vrot.slane %v1202, %v1215
    %v1217 = vcombine.low %v1209, %v1216
    %v1219 = vunpack.c.l.s4 1966171168
    %v1220 = vunpack.c.0.s8 %v1219
    %v1221 = vlaneseq
    %v1222 = vshrl.u32 %v1221, 7
    %v1223 = vsub.s32 %v1220, %v1222
    %v1224 = vrot.slane %v619, %v1223
    %v1226 = vunpack.c.l.s4 1966171168
    %v1227 = vunpack.c.0.s8 %v1226
    %v1228 = vlaneseq
    %v1229 = vshrl.u32 %v1228, 7
    %v1230 = vsub.s32 %v1227, %v1229
    %v1231 = vrot.slane %v1224, %v1230
    %v1232 = vcombine.low %v621, %v645
    %v1233 = vcombine.low %v659, %v667
    %v1234 = vcombine.low %v669, %v652
    %v1235 = vcombine.low %v666, %v668
    %v1237 = vunpack.c.l.s4 1966171168
    %v1238 = vunpack.c.0.s8 %v1237
    %v1239 = vlaneseq
    %v1240 = vshrl.u32 %v1239, 7
    %v1241 = vsub.s32 %v1238, %v1240
    %v1242 = vrot.slane %v1232, %v1241
    %v1244 = vunpack.c.l.s4 1966171168
    %v1245 = vunpack.c.0.s8 %v1244
    %v1246 = vlaneseq
    %v1247 = vshrl.u32 %v1246, 7
    %v1248 = vsub.s32 %v1245, %v1247
    %v1249 = vrot.slane %v1233, %v1248
    %v1251 = vunpack.c.l.s4 1966171168
    %v1252 = vunpack.c.0.s8 %v1251
    %v1253 = vlaneseq
    %v1254 = vshrl.u32 %v1253, 7
    %v1255 = vsub.s32 %v1252, %v1254
    %v1256 = vrot.slane %v1234, %v1255
    %v1258 = vunpack.c.l.s4 1966171168
    %v1259 = vunpack.c.0.s8 %v1258
    %v1260 = vlaneseq
    %v1261 = vshrl.u32 %v1260, 7
    %v1262 = vsub.s32 %v1259, %v1261
    %v1263 = vrot.slane %v1235, %v1262
    %v1264 = vcombine.low %v1242, %v1249
    %v1265 = vcombine.low %v1256, %v1263
    %v1267 = vunpack.c.l.s4 1966171168
    %v1268 = vunpack.c.0.s8 %v1267
    %v1269 = vlaneseq
    %v1270 = vshrl.u32 %v1269, 7
    %v1271 = vsub.s32 %v1268, %v1270
    %v1272 = vrot.slane %v1264, %v1271
    %v1274 = vunpack.c.l.s4 1966171168
    %v1275 = vunpack.c.0.s8 %v1274
    %v1276 = vlaneseq
    %v1277 = vshrl.u32 %v1276, 7
    %v1278 = vsub.s32 %v1275, %v1277
    %v1279 = vrot.slane %v1265, %v1278
    %v1280 = vcombine.low %v1272, %v1279
    %v1282 = vunpack.c.l.s4 1966171168
    %v1283 = vunpack.c.0.s8 %v1282
    %v1284 = vlaneseq
    %v1285 = vshrl.u32 %v1284, 7
    %v1286 = vsub.s32 %v1283, %v1285
    %v1287 = vrot.slane %v670, %v1286
    %v1289 = vunpack.c.l.s4 1966171168
    %v1290 = vunpack.c.0.s8 %v1289
    %v1291 = vlaneseq
    %v1292 = vshrl.u32 %v1291, 7
    %v1293 = vsub.s32 %v1290, %v1292
    %v1294 = vrot.slane %v1287, %v1293
    %v1295 = vcombine.low %v694, %v708
    %v1296 = vcombine.low %v716, %v718
    %v1297 = vcombine.low %v701, %v715
    %v1298 = vcombine.low %v717, %v719
    %v1300 = vunpack.c.l.s4 1966171168
    %v1301 = vunpack.c.0.s8 %v1300
    %v1302 = vlaneseq
    %v1303 = vshrl.u32 %v1302, 7
    %v1304 = vsub.s32 %v1301, %v1303
    %v1305 = vrot.slane %v1295, %v1304
    %v1307 = vunpack.c.l.s4 1966171168
    %v1308 = vunpack.c.0.s8 %v1307
    %v1309 = vlaneseq
    %v1310 = vshrl.u32 %v1309, 7
    %v1311 = vsub.s32 %v1308, %v1310
    %v1312 = vrot.slane %v1296, %v1311
    %v1314 = vunpack.c.l.s4 1966171168
    %v1315 = vunpack.c.0.s8 %v1314
    %v1316 = vlaneseq
    %v1317 = vshrl.u32 %v1316, 7
    %v1318 = vsub.s32 %v1315, %v1317
    %v1319 = vrot.slane %v1297, %v1318
    %v1321 = vunpack.c.l.s4 1966171168
    %v1322 = vunpack.c.0.s8 %v1321
    %v1323 = vlaneseq
    %v1324 = vshrl.u32 %v1323, 7
    %v1325 = vsub.s32 %v1322, %v1324
    %v1326 = vrot.slane %v1298, %v1325
    %v1327 = vcombine.low %v1305, %v1312
    %v1328 = vcombine.low %v1319, %v1326
    %v1330 = vunpack.c.l.s4 1966171168
    %v1331 = vunpack.c.0.s8 %v1330
    %v1332 = vlaneseq
    %v1333 = vshrl.u32 %v1332, 7
    %v1334 = vsub.s32 %v1331, %v1333
    %v1335 = vrot.slane %v1327, %v1334
    %v1337 = vunpack.c.l.s4 1966171168
    %v1338 = vunpack.c.0.s8 %v1337
    %v1339 = vlaneseq
    %v1340 = vshrl.u32 %v1339, 7
    %v1341 = vsub.s32 %v1338, %v1340
    %v1342 = vrot.slane %v1328, %v1341
    %v1343 = vcombine.low %v1335, %v1342
    %v1345 = vunpack.c.l.s4 1966171168
    %v1346 = vunpack.c.0.s8 %v1345
    %v1347 = vlaneseq
    %v1348 = vshrl.u32 %v1347, 7
    %v1349 = vsub.s32 %v1346, %v1348
    %v1350 = vrot.slane %v743, %v1349
    %v1352 = vunpack.c.l.s4 1966171168
    %v1353 = vunpack.c.0.s8 %v1352
    %v1354 = vlaneseq
    %v1355 = vshrl.u32 %v1354, 7
    %v1356 = vsub.s32 %v1353, %v1355
    %v1357 = vrot.slane %v1350, %v1356
    %v1358 = vcombine.low %v757, %v765
    %v1359 = vcombine.low %v767, %v750
    %v1360 = vcombine.low %v764, %v766
    %v1361 = vcombine.low %v768, %v783
    %v1363 = vunpack.c.l.s4 1966171168
    %v1364 = vunpack.c.0.s8 %v1363
    %v1365 = vlaneseq
    %v1366 = vshrl.u32 %v1365, 7
    %v1367 = vsub.s32 %v1364, %v1366
    %v1368 = vrot.slane %v1358, %v1367
    %v1370 = vunpack.c.l.s4 1966171168
    %v1371 = vunpack.c.0.s8 %v1370
    %v1372 = vlaneseq
    %v1373 = vshrl.u32 %v1372, 7
    %v1374 = vsub.s32 %v1371, %v1373
    %v1375 = vrot.slane %v1359, %v1374
    %v1377 = vunpack.c.l.s4 1966171168
    %v1378 = vunpack.c.0.s8 %v1377
    %v1379 = vlaneseq
    %v1380 = vshrl.u32 %v1379, 7
    %v1381 = vsub.s32 %v1378, %v1380
    %v1382 = vrot.slane %v1360, %v1381
    %v1384 = vunpack.c.l.s4 1966171168
    %v1385 = vunpack.c.0.s8 %v1384
    %v1386 = vlaneseq
    %v1387 = vshrl.u32 %v1386, 7
    %v1388 = vsub.s32 %v1385, %v1387
    %v1389 = vrot.slane %v1361, %v1388
    %v1390 = vcombine.low %v1368, %v1375
    %v1391 = vcombine.low %v1382, %v1389
    %v1393 = vunpack.c.l.s4 1966171168
    %v1394 = vunpack.c.0.s8 %v1393
    %v1395 = vlaneseq
    %v1396 = vshrl.u32 %v1395, 7
    %v1397 = vsub.s32 %v1394, %v1396
    %v1398 = vrot.slane %v1390, %v1397
    %v1400 = vunpack.c.l.s4 1966171168
    %v1401 = vunpack.c.0.s8 %v1400
    %v1402 = vlaneseq
    %v1403 = vshrl.u32 %v1402, 7
    %v1404 = vsub.s32 %v1401, %v1403
    %v1405 = vrot.slane %v1391, %v1404
    %v1406 = vcombine.low %v1398, %v1405
    %v1408 = vunpack.c.l.s4 1966171168
    %v1409 = vunpack.c.0.s8 %v1408
    %v1410 = vlaneseq
    %v1411 = vshrl.u32 %v1410, 7
    %v1412 = vsub.s32 %v1409, %v1411
    %v1413 = vrot.slane %v790, %v1412
    %v1415 = vunpack.c.l.s4 1966171168
    %v1416 = vunpack.c.0.s8 %v1415
    %v1417 = vlaneseq
    %v1418 = vshrl.u32 %v1417, 7
    %v1419 = vsub.s32 %v1416, %v1418
    %v1420 = vrot.slane %v1413, %v1419
    %vm1441 = vcmask 261120
    %v1442 = vsel %vm1441, %v839, -inf
    %vm1443 = vcmask 253952
    %v1444 = vsel %vm1443, %v853, -inf
    %v1445 = vmax.f32 %v1442, %v1444
    %v1446 = vrot.slane %v1445, 4
    %v1447 = vmax.f32 %v1445, %v1446
    %v1448 = vrot.slane %v1447, 2
    %v1449 = vmax.f32 %v1447, %v1448
    %v1450 = vrot.slane %v1449, 1
    %v1451 = vmax.f32 %v1449, %v1450
    %v1452 = vsel %vm1441, %v902, -inf
    %v1453 = vsel %vm1443, %v916, -inf
    %v1454 = vmax.f32 %v1452, %v1453
    %v1455 = vrot.slane %v1454, 4
    %v1456 = vmax.f32 %v1454, %v1455
    %v1457 = vrot.slane %v1456, 2
    %v1458 = vmax.f32 %v1456, %v1457
    %v1459 = vrot.slane %v1458, 1
    %v1460 = vmax.f32 %v1458, %v1459
    %v1461 = vsel %vm1441, %v965, -inf
    %v1462 = vsel %vm1443, %v979, -inf
    %v1463 = vmax.f32 %v1461, %v1462
    %v1464 = vrot.slane %v1463, 4
    %v1465 = vmax.f32 %v1463, %v1464
    %v1466 = vrot.slane %v1465, 2
    %v1467 = vmax.f32 %v1465, %v1466
    %v1468 = vrot.slane %v1467, 1
    %v1469 = vmax.f32 %v1467, %v1468
    %v1470 = vsel %vm1441, %v1028, -inf
    %v1471 = vsel %vm1443, %v1042, -inf
    %v1472 = vmax.f32 %v1470, %v1471
    %v1473 = vrot.slane %v1472, 4
    %v1474 = vmax.f32 %v1472, %v1473
    %v1475 = vrot.slane %v1474, 2
    %v1476 = vmax.f32 %v1474, %v1475
    %v1477 = vrot.slane %v1476, 1
    %v1478 = vmax.f32 %v1476, %v1477
    %v1479 = vsel %vm1441, %v1091, -inf
    %v1480 = vsel %vm1443, %v1105, -inf
    %v1481 = vmax.f32 %v1479, %v1480
    %v1482 = vrot.slane %v1481, 4
    %v1483 = vmax.f32 %v1481, %v1482
    %v1484 = vrot.slane %v1483, 2
    %v1485 = vmax.f32 %v1483, %v1484
    %v1486 = vrot.slane %v1485, 1
    %v1487 = vmax.f32 %v1485, %v1486
    %v1488 = vsel %vm1441, %v1154, -inf
    %v1489 = vsel %vm1443, %v1168, -inf
    %v1490 = vmax.f32 %v1488, %v1489
    %v1491 = vrot.slane %v1490, 4
    %v1492 = vmax.f32 %v1490, %v1491
    %v1493 = vrot.slane %v1492, 2
    %v1494 = vmax.f32 %v1492, %v1493
    %v1495 = vrot.slane %v1494, 1
    %v1496 = vmax.f32 %v1494, %v1495
    %v1497 = vsel %vm1441, %v1217, -inf
    %v1498 = vsel %vm1443, %v1231, -inf
    %v1499 = vmax.f32 %v1497, %v1498
    %v1500 = vrot.slane %v1499, 4
    %v1501 = vmax.f32 %v1499, %v1500
    %v1502 = vrot.slane %v1501, 2
    %v1503 = vmax.f32 %v1501, %v1502
    %v1504 = vrot.slane %v1503, 1
    %v1505 = vmax.f32 %v1503, %v1504
    %v1506 = vsel %vm1441, %v1280, -inf
    %v1507 = vsel %vm1443, %v1294, -inf
    %v1508 = vmax.f32 %v1506, %v1507
    %v1509 = vrot.slane %v1508, 4
    %v1510 = vmax.f32 %v1508, %v1509
    %v1511 = vrot.slane %v1510, 2
    %v1512 = vmax.f32 %v1510, %v1511
    %v1513 = vrot.slane %v1512, 1
    %v1514 = vmax.f32 %v1512, %v1513
    %v1515 = vsel %vm1441, %v1343, -inf
    %v1516 = vsel %vm1443, %v1357, -inf
    %v1517 = vmax.f32 %v1515, %v1516
    %v1518 = vrot.slane %v1517, 4
    %v1519 = vmax.f32 %v1517, %v1518
    %v1520 = vrot.slane %v1519, 2
    %v1521 = vmax.f32 %v1519, %v1520
    %v1522 = vrot.slane %v1521, 1
    %v1523 = vmax.f32 %v1521, %v1522
    %v1524 = vsel %vm1441, %v1406, -inf
    %v1525 = vsel %vm1443, %v1420, -inf
    %v1526 = vmax.f32 %v1524, %v1525
    %v1527 = vrot.slane %v1526, 4
    %v1528 = vmax.f32 %v1526, %v1527
    %v1529 = vrot.slane %v1528, 2
    %v1530 = vmax.f32 %v1528, %v1529
    %v1531 = vrot.slane %v1530, 1
    %v1532 = vmax.f32 %v1530, %v1531
    %v1533 = vld [vmem:[%s5] ss:$4 sm:$0x3]
    %v1534 = vld [vmem:[%s2] sm:$0xff]
    %v1535 = vld [vmem:[%s2 + $0x8] sm:$0xff]
    %v1536 = vld [vmem:[%s2 + $0x10] sm:$0xff]
    %v1537 = vld [vmem:[%s2 + $0x18] sm:$0xff]
    %v1538 = vld [vmem:[%s2 + $0x20] sm:$0xff]
    %v1539 = vld [vmem:[%s2 + $0x28] sm:$0xff]
    %v1540 = vld [vmem:[%s2 + $0x30] sm:$0xff]
    %v1541 = vld [vmem:[%s2 + $0x38] sm:$0xff]
    %v1543 = vlaneseq
    %v1544 = vshrl.u32 %v1543, 7
    %v1545 = vsub.s32 0, %v1544
    %v1546 = vrot.slane %v1533, %v1545
    %v1547 = vlaneseq
    %v1548 = vshrl.u32 %v1547, 7
    %v1549 = vsub.s32 1, %v1548
    %v1550 = vrot.slane %v1533, %v1549
    %vm1563 = vcmask 1041409
    %v1564 = vsel %vm1563, %v1460, %v1451
    %vm1565 = vcmask 1042434
    %v1566 = vsel %vm1565, %v1469, %v1564
    %vm1567 = vcmask 1043459
    %v1568 = vsel %vm1567, %v1478, %v1566
    %vm1569 = vcmask 1044484
    %v1570 = vsel %vm1569, %v1487, %v1568
    %vm1571 = vcmask 1045509
    %v1572 = vsel %vm1571, %v1496, %v1570
    %vm1573 = vcmask 1046534
    %v1574 = vsel %vm1573, %v1505, %v1572
    %vm1575 = vcmask 1047559
    %v1576 = vsel %vm1575, %v1514, %v1574
    %v1577 = vsel %vm1563, %v1532, %v1523
    %v1578 = vsel %vm1441, %v1576, 0
    %v1580 = vsel %vm1441, %v1577, 0
    %1582 = vmatprep.subr.mxu0 0.0
    %1583 = vmatpush1.msra.mxu0 0.0
    %1584 = vmatprep.subr.mxu0 0.0
    %1585 = vmatpush1.msra.mxu0 0.0
    %1586 = vmatprep.subr.mxu0 0.0
    %1587 = vmatpush1.msra.mxu0 0.0
    %1588 = vmatprep.subr.mxu0 0.0
    %1589 = vmatpush1.msra.mxu0 0.0
    %1590 = vmatprep.subr.mxu0 0.0
    %1591 = vmatpush1.msra.mxu0 0.0
    %1592 = vmatprep.subr.mxu0 0.0
    %1593 = vmatpush1.msra.mxu0 0.0
    %1594 = vmatprep.subr.mxu0 0.0
    %1595 = vmatpush1.msra.mxu0 0.0
    %1596 = vmatprep.subr.mxu0 0.0
    %1597 = vmatpush1.msra.mxu0 0.0
    %1598 = vmatprep.subr.mxu0 0.0
    %1599 = vmatpush1.msra.mxu0 0.0
    %1600 = vmatprep.subr.mxu0 0.0
    %1601 = vmatpush1.msra.mxu0 0.0
    %1602 = vmatprep.subr.mxu0 0.0
    %1603 = vmatpush1.msra.mxu0 0.0
    %1604 = vmatprep.subr.mxu0 0.0
    %1605 = vmatpush1.msra.mxu0 0.0
    %1606 = vmatprep.subr.mxu0 %v1541
    %1607 = vmatpush1.msra.mxu0 %v1540
    %1608 = vmatprep.subr.mxu0 %v1539
    %1609 = vmatpush1.msra.mxu0 %v1538
    %1610 = vmatprep.subr.mxu0 %v1537
    %1611 = vmatpush1.msra.mxu0 %v1536
    %1612 = vmatprep.subr.mxu0 %v1535
    %1613 = vmatpush1.msra.mxu0 %v1534
    %1614 = vmatprep.subr.mxu0 0.0
    %1615 = vmatpush2.msra.mxu0 0.0
    %1616 = vmatprep.subr.mxu0 0.0
    %1617 = vmatpush2.msra.mxu0 0.0
    %1618 = vmatprep.subr.mxu0 0.0
    %1619 = vmatpush2.msra.mxu0 0.0
    %1620 = vmatprep.subr.mxu0 0.0
    %1621 = vmatpush2.msra.mxu0 0.0
    %1622 = vmatprep.subr.mxu0 0.0
    %1623 = vmatpush2.msra.mxu0 0.0
    %1624 = vmatprep.subr.mxu0 0.0
    %1625 = vmatpush2.msra.mxu0 0.0
    %1626 = vmatprep.subr.mxu0 0.0
    %1627 = vmatpush2.msra.mxu0 0.0
    %1628 = vmatprep.subr.mxu0 0.0
    %1629 = vmatpush2.msra.mxu0 0.0
    %1630 = vmatprep.subr.mxu0 0.0
    %1631 = vmatpush2.msra.mxu0 0.0
    %1632 = vmatprep.subr.mxu0 0.0
    %1633 = vmatpush2.msra.mxu0 0.0
    %1634 = vmatprep.subr.mxu0 0.0
    %1635 = vmatpush2.msra.mxu0 0.0
    %1636 = vmatprep.subr.mxu0 0.0
    %1637 = vmatpush2.msra.mxu0 0.0
    %1638 = vmatprep.subr.mxu0 0.0
    %1639 = vmatpush2.msra.mxu0 0.0
    %1640 = vmatprep.subr.mxu0 0.0
    %1641 = vmatpush2.msra.mxu0 0.0
    %1642 = vmatprep.subr.mxu0 0.0
    %1643 = vmatpush2.msra.mxu0 0.0
    %1644 = vmatprep.subr.mxu0 0.0
    %1645 = vmatpush2.msra.mxu0 0.0
    %1646 = vmatprep.mubr.f32.mxu0 0.0
    %1647 = vmatmul.mubr.f32.gmra.mxu0 %v1578
    %v1648 = vpop.f32.mrf.mxu0
    %v1649 = vadd.f32 %v1546, %v1648
    %v1650 = vpop.f32.mrf.mxu0
    %v1651 = vadd.f32 %v1550, %v1650
    %1652 = vmatprep.mubr.f32.mxu0 0.0
    %1653 = vmatmul.mubr.f32.gmra.mxu0 %v1580
    %v1654 = vpop.f32.mrf.mxu0
    %v1655 = vadd.f32 %v1546, %v1654
    %v1656 = vpop.f32.mrf.mxu0
    %v1657 = vadd.f32 %v1550, %v1656
    %1658 = vdwg.mxu0
    %v1663 = vcombine.low %v1649, %v1651
    %v1664 = vcombine.high %v1649, %v1651
    %v1666 = vunpack.c.l.s4 1966171168
    %v1667 = vunpack.c.0.s8 %v1666
    %v1668 = vlaneseq
    %v1669 = vshrl.u32 %v1668, 7
    %v1670 = vsub.s32 %v1667, %v1669
    %v1671 = vrot.slane %v1663, %v1670
    %v1673 = vunpack.c.l.s4 1966171168
    %v1674 = vunpack.c.0.s8 %v1673
    %v1675 = vlaneseq
    %v1676 = vshrl.u32 %v1675, 7
    %v1677 = vsub.s32 %v1674, %v1676
    %v1678 = vrot.slane %v1664, %v1677
    %v1679 = vcombine.high %v1671, %v1671
    %v1680 = vcombine.high %v1678, %v1678
    %v1682 = vunpack.c.l.s4 1966171168
    %v1683 = vunpack.c.0.s8 %v1682
    %v1684 = vlaneseq
    %v1685 = vshrl.u32 %v1684, 7
    %v1686 = vsub.s32 %v1683, %v1685
    %v1687 = vrot.slane %v1671, %v1686
    %v1689 = vunpack.c.l.s4 1966171168
    %v1690 = vunpack.c.0.s8 %v1689
    %v1691 = vlaneseq
    %v1692 = vshrl.u32 %v1691, 7
    %v1693 = vsub.s32 %v1690, %v1692
    %v1694 = vrot.slane %v1678, %v1693
    %v1696 = vunpack.c.l.s4 1966171168
    %v1697 = vunpack.c.0.s8 %v1696
    %v1698 = vlaneseq
    %v1699 = vshrl.u32 %v1698, 7
    %v1700 = vsub.s32 %v1697, %v1699
    %v1701 = vrot.slane %v1679, %v1700
    %v1703 = vunpack.c.l.s4 1966171168
    %v1704 = vunpack.c.0.s8 %v1703
    %v1705 = vlaneseq
    %v1706 = vshrl.u32 %v1705, 7
    %v1707 = vsub.s32 %v1704, %v1706
    %v1708 = vrot.slane %v1680, %v1707
    %v1709 = vcombine.high %v1687, %v1687
    %v1710 = vcombine.high %v1694, %v1694
    %v1711 = vcombine.high %v1701, %v1701
    %v1712 = vcombine.high %v1708, %v1708
    %v1713 = vcombine.low %v1655, %v1657
    %v1715 = vunpack.c.l.s4 1966171168
    %v1716 = vunpack.c.0.s8 %v1715
    %v1717 = vlaneseq
    %v1718 = vshrl.u32 %v1717, 7
    %v1719 = vsub.s32 %v1716, %v1718
    %v1720 = vrot.slane %v1713, %v1719
    %v1721 = vcombine.high %v1720, %v1720
    %v1723 = vunpack.c.l.s4 1966171168
    %v1724 = vunpack.c.0.s8 %v1723
    %v1725 = vlaneseq
    %v1726 = vshrl.u32 %v1725, 7
    %v1727 = vsub.s32 %v1724, %v1726
    %v1728 = vrot.slane %v1720, %v1727
    %v1730 = vunpack.c.l.s4 1966171168
    %v1731 = vunpack.c.0.s8 %v1730
    %v1732 = vlaneseq
    %v1733 = vshrl.u32 %v1732, 7
    %v1734 = vsub.s32 %v1731, %v1733
    %v1735 = vrot.slane %v1721, %v1734
    %v1746 = vld [vmem:[%s3] sm:$0xff]
    %v1747 = vld [vmem:[%s3 + $0x8] sm:$0xff]
    %v1748 = vld [vmem:[%s3 + $0x10] sm:$0xff]
    %v1749 = vld [vmem:[%s3 + $0x18] sm:$0xff]
    %v1750 = vld [vmem:[%s3 + $0x20] sm:$0xff]
    %v1751 = vld [vmem:[%s3 + $0x28] sm:$0xff]
    %v1752 = vld [vmem:[%s3 + $0x30] sm:$0xff]
    %v1753 = vld [vmem:[%s3 + $0x38] sm:$0xff]
    %v1754 = vld [vmem:[%s3 + $0x40] sm:$0xff]
    %v1755 = vld [vmem:[%s3 + $0x48] sm:$0xff]
    %v1756 = vld [vmem:[%s3 + $0x50] sm:$0xff]
    %v1757 = vld [vmem:[%s3 + $0x58] sm:$0xff]
    %v1758 = vld [vmem:[%s3 + $0x60] sm:$0xff]
    %v1759 = vld [vmem:[%s3 + $0x68] sm:$0xff]
    %v1760 = vld [vmem:[%s3 + $0x70] sm:$0xff]
    %v1761 = vld [vmem:[%s3 + $0x78] sm:$0xff]
    %vm1762 = vcmask 523264
    %v1764 = vsel %vm1762, 0.0, 0
    %1766 = vmatprep.subr.mxu0 0.0
    %1767 = vmatpush1.msra.mxu0 0.0
    %1768 = vmatprep.subr.mxu0 0.0
    %1769 = vmatpush1.msra.mxu0 0.0
    %1770 = vmatprep.subr.mxu0 0.0
    %1771 = vmatpush1.msra.mxu0 0.0
    %1772 = vmatprep.subr.mxu0 0.0
    %1773 = vmatpush1.msra.mxu0 0.0
    %1774 = vmatprep.subr.mxu0 0.0
    %1775 = vmatpush1.msra.mxu0 0.0
    %1776 = vmatprep.subr.mxu0 0.0
    %1777 = vmatpush1.msra.mxu0 0.0
    %1778 = vmatprep.subr.mxu0 0.0
    %1779 = vmatpush1.msra.mxu0 0.0
    %1780 = vmatprep.subr.mxu0 0.0
    %1781 = vmatpush1.msra.mxu0 0.0
    %1782 = vmatprep.subr.mxu0 %v1761
    %1783 = vmatpush1.msra.mxu0 %v1760
    %1784 = vmatprep.subr.mxu0 %v1759
    %1785 = vmatpush1.msra.mxu0 %v1758
    %1786 = vmatprep.subr.mxu0 %v1757
    %1787 = vmatpush1.msra.mxu0 %v1756
    %1788 = vmatprep.subr.mxu0 %v1755
    %1789 = vmatpush1.msra.mxu0 %v1754
    %1790 = vmatprep.subr.mxu0 %v1753
    %1791 = vmatpush1.msra.mxu0 %v1752
    %1792 = vmatprep.subr.mxu0 %v1751
    %1793 = vmatpush1.msra.mxu0 %v1750
    %1794 = vmatprep.subr.mxu0 %v1749
    %1795 = vmatpush1.msra.mxu0 %v1748
    %1796 = vmatprep.subr.mxu0 %v1747
    %1797 = vmatpush1.msra.mxu0 %v1746
    %1798 = vmatprep.subr.mxu0 0.0
    %1799 = vmatpush2.msra.mxu0 0.0
    %1800 = vmatprep.subr.mxu0 0.0
    %1801 = vmatpush2.msra.mxu0 0.0
    %1802 = vmatprep.subr.mxu0 0.0
    %1803 = vmatpush2.msra.mxu0 0.0
    %1804 = vmatprep.subr.mxu0 0.0
    %1805 = vmatpush2.msra.mxu0 0.0
    %1806 = vmatprep.subr.mxu0 0.0
    %1807 = vmatpush2.msra.mxu0 0.0
    %1808 = vmatprep.subr.mxu0 0.0
    %1809 = vmatpush2.msra.mxu0 0.0
    %1810 = vmatprep.subr.mxu0 0.0
    %1811 = vmatpush2.msra.mxu0 0.0
    %1812 = vmatprep.subr.mxu0 0.0
    %1813 = vmatpush2.msra.mxu0 0.0
    %1814 = vmatprep.subr.mxu0 0.0
    %1815 = vmatpush2.msra.mxu0 0.0
    %1816 = vmatprep.subr.mxu0 0.0
    %1817 = vmatpush2.msra.mxu0 0.0
    %1818 = vmatprep.subr.mxu0 0.0
    %1819 = vmatpush2.msra.mxu0 0.0
    %1820 = vmatprep.subr.mxu0 0.0
    %1821 = vmatpush2.msra.mxu0 0.0
    %1822 = vmatprep.subr.mxu0 0.0
    %1823 = vmatpush2.msra.mxu0 0.0
    %1824 = vmatprep.subr.mxu0 0.0
    %1825 = vmatpush2.msra.mxu0 0.0
    %1826 = vmatprep.subr.mxu0 0.0
    %1827 = vmatpush2.msra.mxu0 0.0
    %1828 = vmatprep.subr.mxu0 0.0
    %1829 = vmatpush2.msra.mxu0 0.0
    %1830 = vmatprep.mubr.f32.mxu0 0.0
    %1831 = vmatmul.mubr.f32.gmra.mxu0 %v1764
    %v1832 = vpop.f32.mrf.mxu0
    %v1833 = vadd.f32 0.0, %v1832
    %v1834 = vpop.f32.mrf.mxu0
    %v1835 = vadd.f32 0.0, %v1834
    %1836 = vdwg.mxu0
    %v1839 = vcombine.low %v1833, %v1835
    %v1841 = vunpack.c.l.s4 1966171168
    %v1842 = vunpack.c.0.s8 %v1841
    %v1843 = vlaneseq
    %v1844 = vshrl.u32 %v1843, 7
    %v1845 = vsub.s32 %v1842, %v1844
    %v1846 = vrot.slane %v1839, %v1845
    %v1847 = vcombine.high %v1846, %v1846
    %v1849 = vunpack.c.l.s4 1966171168
    %v1850 = vunpack.c.0.s8 %v1849
    %v1851 = vlaneseq
    %v1852 = vshrl.u32 %v1851, 7
    %v1853 = vsub.s32 %v1850, %v1852
    %v1854 = vrot.slane %v1846, %v1853
    %v1856 = vunpack.c.l.s4 1966171168
    %v1857 = vunpack.c.0.s8 %v1856
    %v1858 = vlaneseq
    %v1859 = vshrl.u32 %v1858, 7
    %v1860 = vsub.s32 %v1857, %v1859
    %v1861 = vrot.slane %v1847, %v1860
    %v1864 = vadd.f32 %v1687, %v1854
    %v1865 = vadd.f32 %v1708, %v1861
    %v1866 = vtanh.pop %v1864
    %v1867 = vtanh.pop %v1865
    %v1868 = vmul.f32 %v1866, 0.5
    %v1869 = vmul.f32 %v1867, 0.5
    %v1870 = vadd.f32 %v1868, 0.5
    %v1871 = vadd.f32 %v1869, 0.5
    %1874 = vrot.lane.b32.xlu0 %v1866, 64
    %v1875 = vpop.permute.xlu0 %1874
    %1876 = vrot.lane.b32.xlu0 %v1867, 64
    %v1877 = vpop.permute.xlu0 %1876
    %v1878 = vrot.slane %v1875, 1
    %v1879 = vrot.slane %v1877, 1
    %v1882 = vmul.f32 %v1878, 0.5
    %v1883 = vmul.f32 %v1879, 0.5
    %v1884 = vadd.f32 %v1882, 0.5
    %v1885 = vadd.f32 %v1883, 0.5
    %v1886 = vmul.f32 %v1870, 0.0
    %v1887 = vmul.f32 %v1871, 0.0
    %v1888 = vrot.slane %v1866, 1
    %v1889 = vrot.slane %v1867, 1
    %v1892 = vmul.f32 %v1870, %v1888
    %v1893 = vmul.f32 %v1871, %v1889
    %1896 = vrot.lane.b32.xlu0 %v1892, 64
    %v1897 = vpop.permute.xlu0 %1896
    %1898 = vrot.lane.b32.xlu0 %v1893, 64
    %v1899 = vpop.permute.xlu0 %1898
    %v1902 = vadd.f32 %v1886, %v1897
    %v1903 = vadd.f32 %v1887, %v1899
    %v1904 = vtanh.pop %v1902
    %v1905 = vtanh.pop %v1903
    %1908 = vrot.lane.b32.xlu0 %v1904, 64
    %v1909 = vpop.permute.xlu0 %1908
    %1910 = vrot.lane.b32.xlu0 %v1905, 64
    %v1911 = vpop.permute.xlu0 %1910
    %v1914 = vmul.f32 %v1884, %v1909
    %v1915 = vmul.f32 %v1885, %v1911
    %v1918 = vcombine.low %v1914, %v1915
    %v1920 = vunpack.c.l.s4 1966171168
    %v1921 = vunpack.c.0.s8 %v1920
    %v1922 = vlaneseq
    %v1923 = vshrl.u32 %v1922, 7
    %v1924 = vsub.s32 %v1921, %v1923
    %v1925 = vrot.slane %v1918, %v1924
    %v1927 = vunpack.c.l.s4 1966171168
    %v1928 = vunpack.c.0.s8 %v1927
    %v1929 = vlaneseq
    %v1930 = vshrl.u32 %v1929, 7
    %v1931 = vsub.s32 %v1928, %v1930
    %v1932 = vrot.slane %v1925, %v1931
    %v1933 = vsel %vm1762, %v1932, 0
    %1935 = vmatprep.subr.mxu0 0.0
    %1936 = vmatpush1.msra.mxu0 0.0
    %1937 = vmatprep.subr.mxu0 0.0
    %1938 = vmatpush1.msra.mxu0 0.0
    %1939 = vmatprep.subr.mxu0 0.0
    %1940 = vmatpush1.msra.mxu0 0.0
    %1941 = vmatprep.subr.mxu0 0.0
    %1942 = vmatpush1.msra.mxu0 0.0
    %1943 = vmatprep.subr.mxu0 0.0
    %1944 = vmatpush1.msra.mxu0 0.0
    %1945 = vmatprep.subr.mxu0 0.0
    %1946 = vmatpush1.msra.mxu0 0.0
    %1947 = vmatprep.subr.mxu0 0.0
    %1948 = vmatpush1.msra.mxu0 0.0
    %1949 = vmatprep.subr.mxu0 0.0
    %1950 = vmatpush1.msra.mxu0 0.0
    %1951 = vmatprep.subr.mxu0 %v1761
    %1952 = vmatpush1.msra.mxu0 %v1760
    %1953 = vmatprep.subr.mxu0 %v1759
    %1954 = vmatpush1.msra.mxu0 %v1758
    %1955 = vmatprep.subr.mxu0 %v1757
    %1956 = vmatpush1.msra.mxu0 %v1756
    %1957 = vmatprep.subr.mxu0 %v1755
    %1958 = vmatpush1.msra.mxu0 %v1754
    %1959 = vmatprep.subr.mxu0 %v1753
    %1960 = vmatpush1.msra.mxu0 %v1752
    %1961 = vmatprep.subr.mxu0 %v1751
    %1962 = vmatpush1.msra.mxu0 %v1750
    %1963 = vmatprep.subr.mxu0 %v1749
    %1964 = vmatpush1.msra.mxu0 %v1748
    %1965 = vmatprep.subr.mxu0 %v1747
    %1966 = vmatpush1.msra.mxu0 %v1746
    %1967 = vmatprep.subr.mxu0 0.0
    %1968 = vmatpush2.msra.mxu0 0.0
    %1969 = vmatprep.subr.mxu0 0.0
    %1970 = vmatpush2.msra.mxu0 0.0
    %1971 = vmatprep.subr.mxu0 0.0
    %1972 = vmatpush2.msra.mxu0 0.0
    %1973 = vmatprep.subr.mxu0 0.0
    %1974 = vmatpush2.msra.mxu0 0.0
    %1975 = vmatprep.subr.mxu0 0.0
    %1976 = vmatpush2.msra.mxu0 0.0
    %1977 = vmatprep.subr.mxu0 0.0
    %1978 = vmatpush2.msra.mxu0 0.0
    %1979 = vmatprep.subr.mxu0 0.0
    %1980 = vmatpush2.msra.mxu0 0.0
    %1981 = vmatprep.subr.mxu0 0.0
    %1982 = vmatpush2.msra.mxu0 0.0
    %1983 = vmatprep.subr.mxu0 0.0
    %1984 = vmatpush2.msra.mxu0 0.0
    %1985 = vmatprep.subr.mxu0 0.0
    %1986 = vmatpush2.msra.mxu0 0.0
    %1987 = vmatprep.subr.mxu0 0.0
    %1988 = vmatpush2.msra.mxu0 0.0
    %1989 = vmatprep.subr.mxu0 0.0
    %1990 = vmatpush2.msra.mxu0 0.0
    %1991 = vmatprep.subr.mxu0 0.0
    %1992 = vmatpush2.msra.mxu0 0.0
    %1993 = vmatprep.subr.mxu0 0.0
    %1994 = vmatpush2.msra.mxu0 0.0
    %1995 = vmatprep.subr.mxu0 0.0
    %1996 = vmatpush2.msra.mxu0 0.0
    %1997 = vmatprep.subr.mxu0 0.0
    %1998 = vmatpush2.msra.mxu0 0.0
    %1999 = vmatprep.mubr.f32.mxu0 0.0
    %2000 = vmatmul.mubr.f32.gmra.mxu0 %v1933
    %v2001 = vpop.f32.mrf.mxu0
    %v2002 = vadd.f32 0.0, %v2001
    %v2003 = vpop.f32.mrf.mxu0
    %v2004 = vadd.f32 0.0, %v2003
    %2005 = vdwg.mxu0
    %v2008 = vcombine.low %v2002, %v2004
    %v2010 = vunpack.c.l.s4 1966171168
    %v2011 = vunpack.c.0.s8 %v2010
    %v2012 = vlaneseq
    %v2013 = vshrl.u32 %v2012, 7
    %v2014 = vsub.s32 %v2011, %v2013
    %v2015 = vrot.slane %v2008, %v2014
    %v2016 = vcombine.high %v2015, %v2015
    %v2018 = vunpack.c.l.s4 1966171168
    %v2019 = vunpack.c.0.s8 %v2018
    %v2020 = vlaneseq
    %v2021 = vshrl.u32 %v2020, 7
    %v2022 = vsub.s32 %v2019, %v2021
    %v2023 = vrot.slane %v2015, %v2022
    %v2025 = vunpack.c.l.s4 1966171168
    %v2026 = vunpack.c.0.s8 %v2025
    %v2027 = vlaneseq
    %v2028 = vshrl.u32 %v2027, 7
    %v2029 = vsub.s32 %v2026, %v2028
    %v2030 = vrot.slane %v2016, %v2029
    %v2033 = vadd.f32 %v1701, %v2023
    %v2034 = vadd.f32 %v1710, %v2030
    %v2035 = vtanh.pop %v2033
    %v2036 = vtanh.pop %v2034
    %v2037 = vmul.f32 %v2035, 0.5
    %v2038 = vmul.f32 %v2036, 0.5
    %v2039 = vadd.f32 %v2037, 0.5
    %v2040 = vadd.f32 %v2038, 0.5
    %2043 = vrot.lane.b32.xlu0 %v2035, 64
    %v2044 = vpop.permute.xlu0 %2043
    %2045 = vrot.lane.b32.xlu0 %v2036, 64
    %v2046 = vpop.permute.xlu0 %2045
    %v2047 = vrot.slane %v2044, 1
    %v2048 = vrot.slane %v2046, 1
    %v2051 = vmul.f32 %v2047, 0.5
    %v2052 = vmul.f32 %v2048, 0.5
    %v2053 = vadd.f32 %v2051, 0.5
    %v2054 = vadd.f32 %v2052, 0.5
    %v2055 = vmul.f32 %v2039, %v1902
    %v2056 = vmul.f32 %v2040, %v1903
    %v2057 = vrot.slane %v2035, 1
    %v2058 = vrot.slane %v2036, 1
    %v2061 = vmul.f32 %v2039, %v2057
    %v2062 = vmul.f32 %v2040, %v2058
    %2065 = vrot.lane.b32.xlu0 %v2061, 64
    %v2066 = vpop.permute.xlu0 %2065
    %2067 = vrot.lane.b32.xlu0 %v2062, 64
    %v2068 = vpop.permute.xlu0 %2067
    %v2071 = vadd.f32 %v2055, %v2066
    %v2072 = vadd.f32 %v2056, %v2068
    %v2073 = vtanh.pop %v2071
    %v2074 = vtanh.pop %v2072
    %2077 = vrot.lane.b32.xlu0 %v2073, 64
    %v2078 = vpop.permute.xlu0 %2077
    %2079 = vrot.lane.b32.xlu0 %v2074, 64
    %v2080 = vpop.permute.xlu0 %2079
    %v2083 = vmul.f32 %v2053, %v2078
    %v2084 = vmul.f32 %v2054, %v2080
    %v2087 = vcombine.low %v2083, %v2084
    %v2089 = vunpack.c.l.s4 1966171168
    %v2090 = vunpack.c.0.s8 %v2089
    %v2091 = vlaneseq
    %v2092 = vshrl.u32 %v2091, 7
    %v2093 = vsub.s32 %v2090, %v2092
    %v2094 = vrot.slane %v2087, %v2093
    %v2096 = vunpack.c.l.s4 1966171168
    %v2097 = vunpack.c.0.s8 %v2096
    %v2098 = vlaneseq
    %v2099 = vshrl.u32 %v2098, 7
    %v2100 = vsub.s32 %v2097, %v2099
    %v2101 = vrot.slane %v2094, %v2100
    %v2102 = vsel %vm1762, %v2101, 0
    %2104 = vmatprep.subr.mxu0 0.0
    %2105 = vmatpush1.msra.mxu0 0.0
    %2106 = vmatprep.subr.mxu0 0.0
    %2107 = vmatpush1.msra.mxu0 0.0
    %2108 = vmatprep.subr.mxu0 0.0
    %2109 = vmatpush1.msra.mxu0 0.0
    %2110 = vmatprep.subr.mxu0 0.0
    %2111 = vmatpush1.msra.mxu0 0.0
    %2112 = vmatprep.subr.mxu0 0.0
    %2113 = vmatpush1.msra.mxu0 0.0
    %2114 = vmatprep.subr.mxu0 0.0
    %2115 = vmatpush1.msra.mxu0 0.0
    %2116 = vmatprep.subr.mxu0 0.0
    %2117 = vmatpush1.msra.mxu0 0.0
    %2118 = vmatprep.subr.mxu0 0.0
    %2119 = vmatpush1.msra.mxu0 0.0
    %2120 = vmatprep.subr.mxu0 %v1761
    %2121 = vmatpush1.msra.mxu0 %v1760
    %2122 = vmatprep.subr.mxu0 %v1759
    %2123 = vmatpush1.msra.mxu0 %v1758
    %2124 = vmatprep.subr.mxu0 %v1757
    %2125 = vmatpush1.msra.mxu0 %v1756
    %2126 = vmatprep.subr.mxu0 %v1755
    %2127 = vmatpush1.msra.mxu0 %v1754
    %2128 = vmatprep.subr.mxu0 %v1753
    %2129 = vmatpush1.msra.mxu0 %v1752
    %2130 = vmatprep.subr.mxu0 %v1751
    %2131 = vmatpush1.msra.mxu0 %v1750
    %2132 = vmatprep.subr.mxu0 %v1749
    %2133 = vmatpush1.msra.mxu0 %v1748
    %2134 = vmatprep.subr.mxu0 %v1747
    %2135 = vmatpush1.msra.mxu0 %v1746
    %2136 = vmatprep.subr.mxu0 0.0
    %2137 = vmatpush2.msra.mxu0 0.0
    %2138 = vmatprep.subr.mxu0 0.0
    %2139 = vmatpush2.msra.mxu0 0.0
    %2140 = vmatprep.subr.mxu0 0.0
    %2141 = vmatpush2.msra.mxu0 0.0
    %2142 = vmatprep.subr.mxu0 0.0
    %2143 = vmatpush2.msra.mxu0 0.0
    %2144 = vmatprep.subr.mxu0 0.0
    %2145 = vmatpush2.msra.mxu0 0.0
    %2146 = vmatprep.subr.mxu0 0.0
    %2147 = vmatpush2.msra.mxu0 0.0
    %2148 = vmatprep.subr.mxu0 0.0
    %2149 = vmatpush2.msra.mxu0 0.0
    %2150 = vmatprep.subr.mxu0 0.0
    %2151 = vmatpush2.msra.mxu0 0.0
    %2152 = vmatprep.subr.mxu0 0.0
    %2153 = vmatpush2.msra.mxu0 0.0
    %2154 = vmatprep.subr.mxu0 0.0
    %2155 = vmatpush2.msra.mxu0 0.0
    %2156 = vmatprep.subr.mxu0 0.0
    %2157 = vmatpush2.msra.mxu0 0.0
    %2158 = vmatprep.subr.mxu0 0.0
    %2159 = vmatpush2.msra.mxu0 0.0
    %2160 = vmatprep.subr.mxu0 0.0
    %2161 = vmatpush2.msra.mxu0 0.0
    %2162 = vmatprep.subr.mxu0 0.0
    %2163 = vmatpush2.msra.mxu0 0.0
    %2164 = vmatprep.subr.mxu0 0.0
    %2165 = vmatpush2.msra.mxu0 0.0
    %2166 = vmatprep.subr.mxu0 0.0
    %2167 = vmatpush2.msra.mxu0 0.0
    %2168 = vmatprep.mubr.f32.mxu0 0.0
    %2169 = vmatmul.mubr.f32.gmra.mxu0 %v2102
    %v2170 = vpop.f32.mrf.mxu0
    %v2171 = vadd.f32 0.0, %v2170
    %v2172 = vpop.f32.mrf.mxu0
    %v2173 = vadd.f32 0.0, %v2172
    %2174 = vdwg.mxu0
    %v2177 = vcombine.low %v2171, %v2173
    %v2179 = vunpack.c.l.s4 1966171168
    %v2180 = vunpack.c.0.s8 %v2179
    %v2181 = vlaneseq
    %v2182 = vshrl.u32 %v2181, 7
    %v2183 = vsub.s32 %v2180, %v2182
    %v2184 = vrot.slane %v2177, %v2183
    %v2185 = vcombine.high %v2184, %v2184
    %v2187 = vunpack.c.l.s4 1966171168
    %v2188 = vunpack.c.0.s8 %v2187
    %v2189 = vlaneseq
    %v2190 = vshrl.u32 %v2189, 7
    %v2191 = vsub.s32 %v2188, %v2190
    %v2192 = vrot.slane %v2184, %v2191
    %v2194 = vunpack.c.l.s4 1966171168
    %v2195 = vunpack.c.0.s8 %v2194
    %v2196 = vlaneseq
    %v2197 = vshrl.u32 %v2196, 7
    %v2198 = vsub.s32 %v2195, %v2197
    %v2199 = vrot.slane %v2185, %v2198
    %v2202 = vadd.f32 %v1709, %v2192
    %v2203 = vadd.f32 %v1712, %v2199
    %v2204 = vtanh.pop %v2202
    %v2205 = vtanh.pop %v2203
    %v2206 = vmul.f32 %v2204, 0.5
    %v2207 = vmul.f32 %v2205, 0.5
    %v2208 = vadd.f32 %v2206, 0.5
    %v2209 = vadd.f32 %v2207, 0.5
    %2212 = vrot.lane.b32.xlu0 %v2204, 64
    %v2213 = vpop.permute.xlu0 %2212
    %2214 = vrot.lane.b32.xlu0 %v2205, 64
    %v2215 = vpop.permute.xlu0 %2214
    %v2216 = vrot.slane %v2213, 1
    %v2217 = vrot.slane %v2215, 1
    %v2220 = vmul.f32 %v2216, 0.5
    %v2221 = vmul.f32 %v2217, 0.5
    %v2222 = vadd.f32 %v2220, 0.5
    %v2223 = vadd.f32 %v2221, 0.5
    %v2224 = vmul.f32 %v2208, %v2071
    %v2225 = vmul.f32 %v2209, %v2072
    %v2226 = vrot.slane %v2204, 1
    %v2227 = vrot.slane %v2205, 1
    %v2230 = vmul.f32 %v2208, %v2226
    %v2231 = vmul.f32 %v2209, %v2227
    %2234 = vrot.lane.b32.xlu0 %v2230, 64
    %v2235 = vpop.permute.xlu0 %2234
    %2236 = vrot.lane.b32.xlu0 %v2231, 64
    %v2237 = vpop.permute.xlu0 %2236
    %v2240 = vadd.f32 %v2224, %v2235
    %v2241 = vadd.f32 %v2225, %v2237
    %v2242 = vtanh.pop %v2240
    %v2243 = vtanh.pop %v2241
    %2246 = vrot.lane.b32.xlu0 %v2242, 64
    %v2247 = vpop.permute.xlu0 %2246
    %2248 = vrot.lane.b32.xlu0 %v2243, 64
    %v2249 = vpop.permute.xlu0 %2248
    %v2252 = vmul.f32 %v2222, %v2247
    %v2253 = vmul.f32 %v2223, %v2249
    %v2256 = vcombine.low %v2252, %v2253
    %v2258 = vunpack.c.l.s4 1966171168
    %v2259 = vunpack.c.0.s8 %v2258
    %v2260 = vlaneseq
    %v2261 = vshrl.u32 %v2260, 7
    %v2262 = vsub.s32 %v2259, %v2261
    %v2263 = vrot.slane %v2256, %v2262
    %v2265 = vunpack.c.l.s4 1966171168
    %v2266 = vunpack.c.0.s8 %v2265
    %v2267 = vlaneseq
    %v2268 = vshrl.u32 %v2267, 7
    %v2269 = vsub.s32 %v2266, %v2268
    %v2270 = vrot.slane %v2263, %v2269
    %v2271 = vsel %vm1762, %v2270, 0
    %2273 = vmatprep.subr.mxu0 0.0
    %2274 = vmatpush1.msra.mxu0 0.0
    %2275 = vmatprep.subr.mxu0 0.0
    %2276 = vmatpush1.msra.mxu0 0.0
    %2277 = vmatprep.subr.mxu0 0.0
    %2278 = vmatpush1.msra.mxu0 0.0
    %2279 = vmatprep.subr.mxu0 0.0
    %2280 = vmatpush1.msra.mxu0 0.0
    %2281 = vmatprep.subr.mxu0 0.0
    %2282 = vmatpush1.msra.mxu0 0.0
    %2283 = vmatprep.subr.mxu0 0.0
    %2284 = vmatpush1.msra.mxu0 0.0
    %2285 = vmatprep.subr.mxu0 0.0
    %2286 = vmatpush1.msra.mxu0 0.0
    %2287 = vmatprep.subr.mxu0 0.0
    %2288 = vmatpush1.msra.mxu0 0.0
    %2289 = vmatprep.subr.mxu0 %v1761
    %2290 = vmatpush1.msra.mxu0 %v1760
    %2291 = vmatprep.subr.mxu0 %v1759
    %2292 = vmatpush1.msra.mxu0 %v1758
    %2293 = vmatprep.subr.mxu0 %v1757
    %2294 = vmatpush1.msra.mxu0 %v1756
    %2295 = vmatprep.subr.mxu0 %v1755
    %2296 = vmatpush1.msra.mxu0 %v1754
    %2297 = vmatprep.subr.mxu0 %v1753
    %2298 = vmatpush1.msra.mxu0 %v1752
    %2299 = vmatprep.subr.mxu0 %v1751
    %2300 = vmatpush1.msra.mxu0 %v1750
    %2301 = vmatprep.subr.mxu0 %v1749
    %2302 = vmatpush1.msra.mxu0 %v1748
    %2303 = vmatprep.subr.mxu0 %v1747
    %2304 = vmatpush1.msra.mxu0 %v1746
    %2305 = vmatprep.subr.mxu0 0.0
    %2306 = vmatpush2.msra.mxu0 0.0
    %2307 = vmatprep.subr.mxu0 0.0
    %2308 = vmatpush2.msra.mxu0 0.0
    %2309 = vmatprep.subr.mxu0 0.0
    %2310 = vmatpush2.msra.mxu0 0.0
    %2311 = vmatprep.subr.mxu0 0.0
    %2312 = vmatpush2.msra.mxu0 0.0
    %2313 = vmatprep.subr.mxu0 0.0
    %2314 = vmatpush2.msra.mxu0 0.0
    %2315 = vmatprep.subr.mxu0 0.0
    %2316 = vmatpush2.msra.mxu0 0.0
    %2317 = vmatprep.subr.mxu0 0.0
    %2318 = vmatpush2.msra.mxu0 0.0
    %2319 = vmatprep.subr.mxu0 0.0
    %2320 = vmatpush2.msra.mxu0 0.0
    %2321 = vmatprep.subr.mxu0 0.0
    %2322 = vmatpush2.msra.mxu0 0.0
    %2323 = vmatprep.subr.mxu0 0.0
    %2324 = vmatpush2.msra.mxu0 0.0
    %2325 = vmatprep.subr.mxu0 0.0
    %2326 = vmatpush2.msra.mxu0 0.0
    %2327 = vmatprep.subr.mxu0 0.0
    %2328 = vmatpush2.msra.mxu0 0.0
    %2329 = vmatprep.subr.mxu0 0.0
    %2330 = vmatpush2.msra.mxu0 0.0
    %2331 = vmatprep.subr.mxu0 0.0
    %2332 = vmatpush2.msra.mxu0 0.0
    %2333 = vmatprep.subr.mxu0 0.0
    %2334 = vmatpush2.msra.mxu0 0.0
    %2335 = vmatprep.subr.mxu0 0.0
    %2336 = vmatpush2.msra.mxu0 0.0
    %2337 = vmatprep.mubr.f32.mxu0 0.0
    %2338 = vmatmul.mubr.f32.gmra.mxu0 %v2271
    %v2339 = vpop.f32.mrf.mxu0
    %v2340 = vadd.f32 0.0, %v2339
    %v2341 = vpop.f32.mrf.mxu0
    %v2342 = vadd.f32 0.0, %v2341
    %2343 = vdwg.mxu0
    %v2346 = vcombine.low %v2340, %v2342
    %v2348 = vunpack.c.l.s4 1966171168
    %v2349 = vunpack.c.0.s8 %v2348
    %v2350 = vlaneseq
    %v2351 = vshrl.u32 %v2350, 7
    %v2352 = vsub.s32 %v2349, %v2351
    %v2353 = vrot.slane %v2346, %v2352
    %v2354 = vcombine.high %v2353, %v2353
    %v2356 = vunpack.c.l.s4 1966171168
    %v2357 = vunpack.c.0.s8 %v2356
    %v2358 = vlaneseq
    %v2359 = vshrl.u32 %v2358, 7
    %v2360 = vsub.s32 %v2357, %v2359
    %v2361 = vrot.slane %v2353, %v2360
    %v2363 = vunpack.c.l.s4 1966171168
    %v2364 = vunpack.c.0.s8 %v2363
    %v2365 = vlaneseq
    %v2366 = vshrl.u32 %v2365, 7
    %v2367 = vsub.s32 %v2364, %v2366
    %v2368 = vrot.slane %v2354, %v2367
    %v2371 = vadd.f32 %v1711, %v2361
    %v2372 = vadd.f32 %v1728, %v2368
    %v2373 = vtanh.pop %v2371
    %v2374 = vtanh.pop %v2372
    %v2375 = vmul.f32 %v2373, 0.5
    %v2376 = vmul.f32 %v2374, 0.5
    %v2377 = vadd.f32 %v2375, 0.5
    %v2378 = vadd.f32 %v2376, 0.5
    %2381 = vrot.lane.b32.xlu0 %v2373, 64
    %v2382 = vpop.permute.xlu0 %2381
    %2383 = vrot.lane.b32.xlu0 %v2374, 64
    %v2384 = vpop.permute.xlu0 %2383
    %v2385 = vrot.slane %v2382, 1
    %v2386 = vrot.slane %v2384, 1
    %v2389 = vmul.f32 %v2385, 0.5
    %v2390 = vmul.f32 %v2386, 0.5
    %v2391 = vadd.f32 %v2389, 0.5
    %v2392 = vadd.f32 %v2390, 0.5
    %v2393 = vmul.f32 %v2377, %v2240
    %v2394 = vmul.f32 %v2378, %v2241
    %v2395 = vrot.slane %v2373, 1
    %v2396 = vrot.slane %v2374, 1
    %v2399 = vmul.f32 %v2377, %v2395
    %v2400 = vmul.f32 %v2378, %v2396
    %2403 = vrot.lane.b32.xlu0 %v2399, 64
    %v2404 = vpop.permute.xlu0 %2403
    %2405 = vrot.lane.b32.xlu0 %v2400, 64
    %v2406 = vpop.permute.xlu0 %2405
    %v2409 = vadd.f32 %v2393, %v2404
    %v2410 = vadd.f32 %v2394, %v2406
    %v2411 = vtanh.pop %v2409
    %v2412 = vtanh.pop %v2410
    %2415 = vrot.lane.b32.xlu0 %v2411, 64
    %v2416 = vpop.permute.xlu0 %2415
    %2417 = vrot.lane.b32.xlu0 %v2412, 64
    %v2418 = vpop.permute.xlu0 %2417
    %v2421 = vmul.f32 %v2391, %v2416
    %v2422 = vmul.f32 %v2392, %v2418
    %v2425 = vcombine.low %v2421, %v2422
    %v2427 = vunpack.c.l.s4 1966171168
    %v2428 = vunpack.c.0.s8 %v2427
    %v2429 = vlaneseq
    %v2430 = vshrl.u32 %v2429, 7
    %v2431 = vsub.s32 %v2428, %v2430
    %v2432 = vrot.slane %v2425, %v2431
    %v2434 = vunpack.c.l.s4 1966171168
    %v2435 = vunpack.c.0.s8 %v2434
    %v2436 = vlaneseq
    %v2437 = vshrl.u32 %v2436, 7
    %v2438 = vsub.s32 %v2435, %v2437
    %v2439 = vrot.slane %v2432, %v2438
    %v2440 = vsel %vm1762, %v2439, 0
    %2442 = vmatprep.subr.mxu0 0.0
    %2443 = vmatpush1.msra.mxu0 0.0
    %2444 = vmatprep.subr.mxu0 0.0
    %2445 = vmatpush1.msra.mxu0 0.0
    %2446 = vmatprep.subr.mxu0 0.0
    %2447 = vmatpush1.msra.mxu0 0.0
    %2448 = vmatprep.subr.mxu0 0.0
    %2449 = vmatpush1.msra.mxu0 0.0
    %2450 = vmatprep.subr.mxu0 0.0
    %2451 = vmatpush1.msra.mxu0 0.0
    %2452 = vmatprep.subr.mxu0 0.0
    %2453 = vmatpush1.msra.mxu0 0.0
    %2454 = vmatprep.subr.mxu0 0.0
    %2455 = vmatpush1.msra.mxu0 0.0
    %2456 = vmatprep.subr.mxu0 0.0
    %2457 = vmatpush1.msra.mxu0 0.0
    %2458 = vmatprep.subr.mxu0 %v1761
    %2459 = vmatpush1.msra.mxu0 %v1760
    %2460 = vmatprep.subr.mxu0 %v1759
    %2461 = vmatpush1.msra.mxu0 %v1758
    %2462 = vmatprep.subr.mxu0 %v1757
    %2463 = vmatpush1.msra.mxu0 %v1756
    %2464 = vmatprep.subr.mxu0 %v1755
    %2465 = vmatpush1.msra.mxu0 %v1754
    %2466 = vmatprep.subr.mxu0 %v1753
    %2467 = vmatpush1.msra.mxu0 %v1752
    %2468 = vmatprep.subr.mxu0 %v1751
    %2469 = vmatpush1.msra.mxu0 %v1750
    %2470 = vmatprep.subr.mxu0 %v1749
    %2471 = vmatpush1.msra.mxu0 %v1748
    %2472 = vmatprep.subr.mxu0 %v1747
    %2473 = vmatpush1.msra.mxu0 %v1746
    %2474 = vmatprep.subr.mxu0 0.0
    %2475 = vmatpush2.msra.mxu0 0.0
    %2476 = vmatprep.subr.mxu0 0.0
    %2477 = vmatpush2.msra.mxu0 0.0
    %2478 = vmatprep.subr.mxu0 0.0
    %2479 = vmatpush2.msra.mxu0 0.0
    %2480 = vmatprep.subr.mxu0 0.0
    %2481 = vmatpush2.msra.mxu0 0.0
    %2482 = vmatprep.subr.mxu0 0.0
    %2483 = vmatpush2.msra.mxu0 0.0
    %2484 = vmatprep.subr.mxu0 0.0
    %2485 = vmatpush2.msra.mxu0 0.0
    %2486 = vmatprep.subr.mxu0 0.0
    %2487 = vmatpush2.msra.mxu0 0.0
    %2488 = vmatprep.subr.mxu0 0.0
    %2489 = vmatpush2.msra.mxu0 0.0
    %2490 = vmatprep.subr.mxu0 0.0
    %2491 = vmatpush2.msra.mxu0 0.0
    %2492 = vmatprep.subr.mxu0 0.0
    %2493 = vmatpush2.msra.mxu0 0.0
    %2494 = vmatprep.subr.mxu0 0.0
    %2495 = vmatpush2.msra.mxu0 0.0
    %2496 = vmatprep.subr.mxu0 0.0
    %2497 = vmatpush2.msra.mxu0 0.0
    %2498 = vmatprep.subr.mxu0 0.0
    %2499 = vmatpush2.msra.mxu0 0.0
    %2500 = vmatprep.subr.mxu0 0.0
    %2501 = vmatpush2.msra.mxu0 0.0
    %2502 = vmatprep.subr.mxu0 0.0
    %2503 = vmatpush2.msra.mxu0 0.0
    %2504 = vmatprep.subr.mxu0 0.0
    %2505 = vmatpush2.msra.mxu0 0.0
    %2506 = vmatprep.mubr.f32.mxu0 0.0
    %2507 = vmatmul.mubr.f32.gmra.mxu0 %v2440
    %v2508 = vpop.f32.mrf.mxu0
    %v2509 = vadd.f32 0.0, %v2508
    %v2510 = vpop.f32.mrf.mxu0
    %v2511 = vadd.f32 0.0, %v2510
    %2512 = vdwg.mxu0
    %v2515 = vcombine.low %v2509, %v2511
    %v2517 = vunpack.c.l.s4 1966171168
    %v2518 = vunpack.c.0.s8 %v2517
    %v2519 = vlaneseq
    %v2520 = vshrl.u32 %v2519, 7
    %v2521 = vsub.s32 %v2518, %v2520
    %v2522 = vrot.slane %v2515, %v2521
    %v2523 = vcombine.high %v2522, %v2522
    %v2525 = vunpack.c.l.s4 1966171168
    %v2526 = vunpack.c.0.s8 %v2525
    %v2527 = vlaneseq
    %v2528 = vshrl.u32 %v2527, 7
    %v2529 = vsub.s32 %v2526, %v2528
    %v2530 = vrot.slane %v2522, %v2529
    %v2532 = vunpack.c.l.s4 1966171168
    %v2533 = vunpack.c.0.s8 %v2532
    %v2534 = vlaneseq
    %v2535 = vshrl.u32 %v2534, 7
    %v2536 = vsub.s32 %v2533, %v2535
    %v2537 = vrot.slane %v2523, %v2536
    %v2540 = vadd.f32 %v1694, %v2530
    %v2541 = vadd.f32 %v1735, %v2537
    %v2542 = vtanh.pop %v2540
    %v2543 = vtanh.pop %v2541
    %v2544 = vmul.f32 %v2542, 0.5
    %v2545 = vmul.f32 %v2543, 0.5
    %v2546 = vadd.f32 %v2544, 0.5
    %v2547 = vadd.f32 %v2545, 0.5
    %2550 = vrot.lane.b32.xlu0 %v2542, 64
    %v2551 = vpop.permute.xlu0 %2550
    %2552 = vrot.lane.b32.xlu0 %v2543, 64
    %v2553 = vpop.permute.xlu0 %2552
    %v2554 = vrot.slane %v2551, 1
    %v2555 = vrot.slane %v2553, 1
    %v2558 = vmul.f32 %v2554, 0.5
    %v2559 = vmul.f32 %v2555, 0.5
    %v2560 = vadd.f32 %v2558, 0.5
    %v2561 = vadd.f32 %v2559, 0.5
    %v2562 = vmul.f32 %v2546, %v2409
    %v2563 = vmul.f32 %v2547, %v2410
    %v2564 = vrot.slane %v2542, 1
    %v2565 = vrot.slane %v2543, 1
    %v2568 = vmul.f32 %v2546, %v2564
    %v2569 = vmul.f32 %v2547, %v2565
    %2572 = vrot.lane.b32.xlu0 %v2568, 64
    %v2573 = vpop.permute.xlu0 %2572
    %2574 = vrot.lane.b32.xlu0 %v2569, 64
    %v2575 = vpop.permute.xlu0 %2574
    %v2578 = vadd.f32 %v2562, %v2573
    %v2579 = vadd.f32 %v2563, %v2575
    %v2580 = vtanh.pop %v2578
    %v2581 = vtanh.pop %v2579
    %2584 = vrot.lane.b32.xlu0 %v2580, 64
    %v2585 = vpop.permute.xlu0 %2584
    %2586 = vrot.lane.b32.xlu0 %v2581, 64
    %v2587 = vpop.permute.xlu0 %2586
    %v2590 = vmul.f32 %v2560, %v2585
    %v2591 = vmul.f32 %v2561, %v2587
    %v2592 = vld [vmem:[%s4] sm:$0xff]
    %v2593 = vld [vmem:[%s4 + $0x8] sm:$0xff]
    %v2594 = vld [vmem:[%s4 + $0x10] sm:$0xff]
    %v2595 = vld [vmem:[%s4 + $0x18] sm:$0xff]
    %v2596 = vld [vmem:[%s4 + $0x20] sm:$0xff]
    %v2597 = vld [vmem:[%s4 + $0x28] sm:$0xff]
    %v2598 = vld [vmem:[%s4 + $0x30] sm:$0xff]
    %v2599 = vld [vmem:[%s4 + $0x38] sm:$0xff]
    %v2600 = vld [vmem:[%s4 + $0x40] sm:$0xff]
    %v2601 = vld [vmem:[%s5 + $0x1] sm:$0x1]
    %v2602 = vld [vmem:[%s5 + $0x2] sm:$0x1]
    %v2603 = vlaneseq
    %v2604 = vshrl.u32 %v2603, 7
    %v2605 = vsub.s32 0, %v2604
    %v2606 = vrot.slane %v2601, %v2605
    %v2609 = vcombine.low %v2590, %v2591
    %v2611 = vunpack.c.l.s4 1966171168
    %v2612 = vunpack.c.0.s8 %v2611
    %v2613 = vlaneseq
    %v2614 = vshrl.u32 %v2613, 7
    %v2615 = vsub.s32 %v2612, %v2614
    %v2616 = vrot.slane %v2609, %v2615
    %v2618 = vunpack.c.l.s4 1966171168
    %v2619 = vunpack.c.0.s8 %v2618
    %v2620 = vlaneseq
    %v2621 = vshrl.u32 %v2620, 7
    %v2622 = vsub.s32 %v2619, %v2621
    %v2623 = vrot.slane %v2616, %v2622
    %v2624 = vsel %vm1762, %v2623, 0
    %2626 = vmatprep.subr.mxu0 0.0
    %2627 = vmatpush1.msra.mxu0 0.0
    %2628 = vmatprep.subr.mxu0 0.0
    %2629 = vmatpush1.msra.mxu0 0.0
    %2630 = vmatprep.subr.mxu0 0.0
    %2631 = vmatpush1.msra.mxu0 0.0
    %2632 = vmatprep.subr.mxu0 0.0
    %2633 = vmatpush1.msra.mxu0 0.0
    %2634 = vmatprep.subr.mxu0 0.0
    %2635 = vmatpush1.msra.mxu0 0.0
    %2636 = vmatprep.subr.mxu0 0.0
    %2637 = vmatpush1.msra.mxu0 0.0
    %2638 = vmatprep.subr.mxu0 0.0
    %2639 = vmatpush1.msra.mxu0 0.0
    %2640 = vmatprep.subr.mxu0 0.0
    %2641 = vmatpush1.msra.mxu0 0.0
    %2642 = vmatprep.subr.mxu0 0.0
    %2643 = vmatpush1.msra.mxu0 %v2599
    %2644 = vmatprep.subr.mxu0 0.0
    %2645 = vmatpush1.msra.mxu0 %v2598
    %2646 = vmatprep.subr.mxu0 0.0
    %2647 = vmatpush1.msra.mxu0 %v2597
    %2648 = vmatprep.subr.mxu0 0.0
    %2649 = vmatpush1.msra.mxu0 %v2596
    %2650 = vmatprep.subr.mxu0 0.0
    %2651 = vmatpush1.msra.mxu0 %v2595
    %2652 = vmatprep.subr.mxu0 0.0
    %2653 = vmatpush1.msra.mxu0 %v2594
    %2654 = vmatprep.subr.mxu0 0.0
    %2655 = vmatpush1.msra.mxu0 %v2593
    %2656 = vmatprep.subr.mxu0 0.0
    %2657 = vmatpush1.msra.mxu0 %v2592
    %2658 = vmatprep.subr.mxu0 0.0
    %2659 = vmatpush2.msra.mxu0 0.0
    %2660 = vmatprep.subr.mxu0 0.0
    %2661 = vmatpush2.msra.mxu0 0.0
    %2662 = vmatprep.subr.mxu0 0.0
    %2663 = vmatpush2.msra.mxu0 0.0
    %2664 = vmatprep.subr.mxu0 0.0
    %2665 = vmatpush2.msra.mxu0 0.0
    %2666 = vmatprep.subr.mxu0 0.0
    %2667 = vmatpush2.msra.mxu0 0.0
    %2668 = vmatprep.subr.mxu0 0.0
    %2669 = vmatpush2.msra.mxu0 0.0
    %2670 = vmatprep.subr.mxu0 0.0
    %2671 = vmatpush2.msra.mxu0 0.0
    %2672 = vmatprep.subr.mxu0 0.0
    %2673 = vmatpush2.msra.mxu0 0.0
    %2674 = vmatprep.subr.mxu0 0.0
    %2675 = vmatpush2.msra.mxu0 0.0
    %2676 = vmatprep.subr.mxu0 0.0
    %2677 = vmatpush2.msra.mxu0 0.0
    %2678 = vmatprep.subr.mxu0 0.0
    %2679 = vmatpush2.msra.mxu0 0.0
    %2680 = vmatprep.subr.mxu0 0.0
    %2681 = vmatpush2.msra.mxu0 0.0
    %2682 = vmatprep.subr.mxu0 0.0
    %2683 = vmatpush2.msra.mxu0 0.0
    %2684 = vmatprep.subr.mxu0 0.0
    %2685 = vmatpush2.msra.mxu0 0.0
    %2686 = vmatprep.subr.mxu0 0.0
    %2687 = vmatpush2.msra.mxu0 0.0
    %2688 = vmatprep.subr.mxu0 0.0
    %2689 = vmatpush2.msra.mxu0 0.0
    %2690 = vmatprep.mubr.f32.mxu0 0.0
    %2691 = vmatmul.mubr.f32.gmra.mxu0 %v2624
    %v2692 = vpop.f32.mrf.mxu0
    %v2693 = vadd.f32 %v2606, %v2692
    %v2694 = vpop.f32.mrf.mxu0
    %2695 = vdwg.mxu0
    %v2696 = vmax.f32 %v2693, 0.0
    %v2697 = vlaneseq
    %v2698 = vshrl.u32 %v2697, 7
    %v2699 = vsub.s32 0, %v2698
    %v2700 = vrot.slane %v2602, %v2699
    %vm2701 = vcmask 64512
    %v2703 = vsel %vm2701, %v2696, 0
    %2705 = vmatprep.subr.mxu0 0.0
    %2706 = vmatpush1.msra.mxu0 0.0
    %2707 = vmatprep.subr.mxu0 0.0
    %2708 = vmatpush1.msra.mxu0 0.0
    %2709 = vmatprep.subr.mxu0 0.0
    %2710 = vmatpush1.msra.mxu0 0.0
    %2711 = vmatprep.subr.mxu0 0.0
    %2712 = vmatpush1.msra.mxu0 0.0
    %2713 = vmatprep.subr.mxu0 0.0
    %2714 = vmatpush1.msra.mxu0 0.0
    %2715 = vmatprep.subr.mxu0 0.0
    %2716 = vmatpush1.msra.mxu0 0.0
    %2717 = vmatprep.subr.mxu0 0.0
    %2718 = vmatpush1.msra.mxu0 0.0
    %2719 = vmatprep.subr.mxu0 0.0
    %2720 = vmatpush1.msra.mxu0 0.0
    %2721 = vmatprep.subr.mxu0 0.0
    %2722 = vmatpush1.msra.mxu0 0.0
    %2723 = vmatprep.subr.mxu0 0.0
    %2724 = vmatpush1.msra.mxu0 0.0
    %2725 = vmatprep.subr.mxu0 0.0
    %2726 = vmatpush1.msra.mxu0 0.0
    %2727 = vmatprep.subr.mxu0 0.0
    %2728 = vmatpush1.msra.mxu0 0.0
    %2729 = vmatprep.subr.mxu0 0.0
    %2730 = vmatpush1.msra.mxu0 0.0
    %2731 = vmatprep.subr.mxu0 0.0
    %2732 = vmatpush1.msra.mxu0 0.0
    %2733 = vmatprep.subr.mxu0 0.0
    %2734 = vmatpush1.msra.mxu0 0.0
    %2735 = vmatprep.subr.mxu0 0.0
    %2736 = vmatpush1.msra.mxu0 %v2600
    %2737 = vmatprep.subr.mxu0 0.0
    %2738 = vmatpush2.msra.mxu0 0.0
    %2739 = vmatprep.subr.mxu0 0.0
    %2740 = vmatpush2.msra.mxu0 0.0
    %2741 = vmatprep.subr.mxu0 0.0
    %2742 = vmatpush2.msra.mxu0 0.0
    %2743 = vmatprep.subr.mxu0 0.0
    %2744 = vmatpush2.msra.mxu0 0.0
    %2745 = vmatprep.subr.mxu0 0.0
    %2746 = vmatpush2.msra.mxu0 0.0
    %2747 = vmatprep.subr.mxu0 0.0
    %2748 = vmatpush2.msra.mxu0 0.0
    %2749 = vmatprep.subr.mxu0 0.0
    %2750 = vmatpush2.msra.mxu0 0.0
    %2751 = vmatprep.subr.mxu0 0.0
    %2752 = vmatpush2.msra.mxu0 0.0
    %2753 = vmatprep.subr.mxu0 0.0
    %2754 = vmatpush2.msra.mxu0 0.0
    %2755 = vmatprep.subr.mxu0 0.0
    %2756 = vmatpush2.msra.mxu0 0.0
    %2757 = vmatprep.subr.mxu0 0.0
    %2758 = vmatpush2.msra.mxu0 0.0
    %2759 = vmatprep.subr.mxu0 0.0
    %2760 = vmatpush2.msra.mxu0 0.0
    %2761 = vmatprep.subr.mxu0 0.0
    %2762 = vmatpush2.msra.mxu0 0.0
    %2763 = vmatprep.subr.mxu0 0.0
    %2764 = vmatpush2.msra.mxu0 0.0
    %2765 = vmatprep.subr.mxu0 0.0
    %2766 = vmatpush2.msra.mxu0 0.0
    %2767 = vmatprep.subr.mxu0 0.0
    %2768 = vmatpush2.msra.mxu0 0.0
    %2769 = vmatprep.mubr.f32.mxu0 0.0
    %2770 = vmatmul.mubr.f32.gmra.mxu0 %v2703
    %v2771 = vpop.f32.mrf.mxu0
    %v2772 = vadd.f32 %v2700, %v2771
    %v2773 = vpop.f32.mrf.mxu0
    %2774 = vdwg.mxu0
    %vm2775 = vcmask 9216
    %2776 = vst.msk [vmem:[#allocation2] sm:$0x3] %vm2775, %v2772
    // Predicated region
    $region26: #{cnn_lstm_forward.1} parent=1 // pred_check
      _
    $region27: #{cnn_lstm_forward.1} parent=1 // pred_check_branch
      %2778 = sbr.rel (0) target = $region29
    $region28: #{cnn_lstm_forward.1} parent=1 // pred_region
      %s2780 = ssub.s32 32, 32
      %2781 = vsyncadd [#allocation3], %s2780
      %s2783 = sshll.u32 [#allocation2], 4
      %s2784 = int_to_ptr.vmem [resolvable:$true] %s2783
      %2786 = dma.vmem_to_hbm [thread:$0]  %s2784, 32, %s6, [#allocation3]
    $region29: #{cnn_lstm_forward.1} parent=1 // pred_fallthru
      _
    // Predicated region
    $region30: #{cnn_lstm_forward.1} parent=1 // pred_check
      _
    $region31: #{cnn_lstm_forward.1} parent=1 // pred_check_branch
      %2788 = sbr.rel (0) target = $region33
    $region32: #{cnn_lstm_forward.1} parent=1 // pred_region
      %2789 = dma.done [#allocation3], 32
    $region33: #{cnn_lstm_forward.1} parent=1 // pred_fallthru
      _
    %2790 = vsyncpa [#allocation3], 1

</llo_original>
